<compile_context>
chip_gen: v6e
topology: v6e:2x2x1
jax: 0.10.0
libtpu: 0.0.40
codegen_flags: <defaults>
</compile_context>

<pallas_src>
import functools
import math

import jax
import jax.numpy as jnp
from jax.experimental import pallas as pl
from jax.experimental.pallas import tpu as pltpu

_LOG_2PI = math.log(2.0 * math.pi)


def _round_up(n, m):
    return ((n + m - 1) // m) * m


def _mdn_head_kernel(w_ref, mu_ref, dd_ref, v_ref, x_ref, out_ref, lps_sc,
                     *, nk, nd, nr):
    """One grid step: TB batch elements on lanes.

    w_ref  : (K, TB)        mixture weights (positive)
    mu_ref : (K, D, TB)     component means
    dd_ref : (K, D, TB)     diagonal of covariance (positive)
    v_ref  : (K, R, D, TB)  V^T  (low-rank factor, transposed)
    x_ref  : (D, TB)        targets
    out_ref: (3, TB)        rows: [mixture log-prob, sum|off-diag precision|,
                                   mean_D (mixture_mean - x)^2]
    lps_sc : (K, TB)        VMEM scratch for per-component log-probs
    """
    f32 = jnp.float32
    tb = x_ref.shape[-1]

    x = x_ref[...].astype(f32)                         # (D, TB)
    w = w_ref[...].astype(f32)                         # (K, TB)

    w_sum = jnp.sum(w, axis=0, keepdims=True)          # (1, TB)
    inv_wsum = pl.reciprocal(w_sum)                    # exact divide
    log_w = jnp.log(w) - jnp.log(w_sum)                # (K, TB)
    w_norm = w * inv_wsum                              # (K, TB)

    reg_acc = jnp.zeros((1, tb), f32)
    mean_acc = jnp.zeros((nd, tb), f32)

    for k in range(nk):                                # K is small & static
        d_k = dd_ref[k].astype(f32)                    # (D, TB)
        mu_k = mu_ref[k].astype(f32)                   # (D, TB)
        v_k = v_ref[k].astype(f32)                     # (R, D, TB)
        d_inv = pl.reciprocal(d_k)                     # (D, TB)
        diff = x - mu_k                                # (D, TB)

        # rows of B = V^T D^{-1}, each (D, TB)
        b_rows = [v_k[i] * d_inv for i in range(nr)]

        # capacitance C = I_R + V^T D^{-1} V, entries are (1, TB) lane vectors
        cap = [[None] * nr for _ in range(nr)]
        for i in range(nr):
            for j in range(i + 1):
                e = jnp.sum(b_rows[i] * v_k[j], axis=0, keepdims=True)
                if i == j:
                    e = e + 1.0
                cap[i][j] = e
                cap[j][i] = e

        # Gauss-Jordan (C is SPD -> no pivoting): solve C @ M = B,
        # accumulating log det(C) from the pivots.  All ops full-lane.
        m_rows = list(b_rows)
        logdet_cap = jnp.zeros((1, tb), f32)
        for i in range(nr):
            piv = cap[i][i]
            logdet_cap = logdet_cap + jnp.log(piv)
            inv_p = pl.reciprocal(piv)
            cap[i] = [e * inv_p for e in cap[i]]
            m_rows[i] = m_rows[i] * inv_p
            for j in range(nr):
                if j == i:
                    continue
                f = cap[j][i]
                cap[j] = [cap[j][c] - f * cap[i][c] for c in range(nr)]
                m_rows[j] = m_rows[j] - f * m_rows[i]

        # Woodbury Mahalanobis: (x-mu)^T D^{-1} (x-mu) - t^T C^{-1} t
        m1 = jnp.sum(diff * diff * d_inv, axis=0, keepdims=True)      # (1, TB)
        m2 = jnp.zeros((1, tb), f32)
        for i in range(nr):
            t_i = jnp.sum(b_rows[i] * diff, axis=0, keepdims=True)
            ct_i = jnp.sum(m_rows[i] * diff, axis=0, keepdims=True)
            m2 = m2 + t_i * ct_i
        maha = m1 - m2

        logdet = logdet_cap + jnp.sum(jnp.log(d_k), axis=0, keepdims=True)
        comp_lp = -0.5 * (nd * _LOG_2PI + logdet + maha)              # (1, TB)
        lps_sc[k:k + 1, :] = log_w[k:k + 1, :] + comp_lp

        # Precision = diag(D^{-1}) - B^T C^{-1} B; off-diagonal part is
        # -(B^T M).  Row a of B^T M = sum_i B[i,a] * M[i,:]  -> (D, TB),
        # accumulate sum|row| minus the diagonal entry.
        for a in range(nd):
            row_a = b_rows[0][a:a + 1, :] * m_rows[0]
            for i in range(1, nr):
                row_a = row_a + b_rows[i][a:a + 1, :] * m_rows[i]
            abs_row = jnp.abs(row_a)                                  # (D, TB)
            reg_acc = reg_acc + (jnp.sum(abs_row, axis=0, keepdims=True)
                                 - abs_row[a:a + 1, :])

        mean_acc = mean_acc + w_norm[k:k + 1, :] * mu_k

    # mixture log prob = logsumexp_k (log w_k + comp_lp_k), one stacked pass
    lps = lps_sc[...]                                                 # (K, TB)
    mx = jnp.max(lps, axis=0, keepdims=True)
    lp = mx + jnp.log(jnp.sum(jnp.exp(lps - mx), axis=0, keepdims=True))

    err = mean_acc - x
    sq = jnp.sum(err * err, axis=0, keepdims=True) * (1.0 / nd)

    # single lane-dense output block (3, TB)
    out_ref[0:1, :] = lp
    out_ref[1:2, :] = reg_acc
    out_ref[2:3, :] = sq


def _mdn_stats(w, mu, dd, v, x, *, max_tb=1024):
    """w:(B,K) mu/dd:(B,K,D) v:(B,K,D,R) x:(B,D) -> per-batch (lp, reg_sum, mse)."""
    B, K = w.shape
    D = mu.shape[-1]
    R = v.shape[-1]

    # Re-layout so batch is the last (lane) axis.
    wT = jnp.transpose(w).astype(jnp.float32)                 # (K, B)
    muT = jnp.transpose(mu, (1, 2, 0)).astype(jnp.float32)    # (K, D, B)
    ddT = jnp.transpose(dd, (1, 2, 0)).astype(jnp.float32)    # (K, D, B)
    vT = jnp.transpose(v, (1, 3, 2, 0)).astype(jnp.float32)   # (K, R, D, B)
    xT = jnp.transpose(x).astype(jnp.float32)                 # (D, B)

    tb = min(max_tb, _round_up(B, 128))                       # lane-dense block
    b_pad = _round_up(B, tb)
    pad = b_pad - B
    if pad:
        # padded lanes use safe values (w=1, D=1, mu=V=x=0) and are sliced off
        wT = jnp.pad(wT, ((0, 0), (0, pad)), constant_values=1.0)
        ddT = jnp.pad(ddT, ((0, 0), (0, 0), (0, pad)), constant_values=1.0)
        muT = jnp.pad(muT, ((0, 0), (0, 0), (0, pad)))
        vT = jnp.pad(vT, ((0, 0), (0, 0), (0, 0), (0, pad)))
        xT = jnp.pad(xT, ((0, 0), (0, pad)))

    kernel = functools.partial(_mdn_head_kernel, nk=K, nd=D, nr=R)
    out = pl.pallas_call(
        kernel,
        grid=(b_pad // tb,),
        in_specs=[
            pl.BlockSpec((K, tb), lambda b: (0, b)),
            pl.BlockSpec((K, D, tb), lambda b: (0, 0, b)),
            pl.BlockSpec((K, D, tb), lambda b: (0, 0, b)),
            pl.BlockSpec((K, R, D, tb), lambda b: (0, 0, 0, b)),
            pl.BlockSpec((D, tb), lambda b: (0, b)),
        ],
        out_specs=pl.BlockSpec((3, tb), lambda b: (0, b)),
        out_shape=jax.ShapeDtypeStruct((3, b_pad), jnp.float32),
        scratch_shapes=[pltpu.VMEM((K, tb), jnp.float32)],
        compiler_params=pltpu.CompilerParams(
            dimension_semantics=("parallel",)),
    )(wT, muT, ddT, vT, xT)
    return out[0, :B], out[1, :B], out[2, :B]


class LowRankMDNhead:
    """JAX/Pallas port of the PyTorch LowRankMDNhead forward pass."""

    def __init__(self, n_components, n_vars, n_rank, pred_len=12, reg_coef=0.1,
                 consider_neighbors=False):
        self.n_components = n_components
        self.n_vars = n_vars
        self.n_rank = n_rank
        self.pred_len = pred_len
        self.reg_coef = reg_coef
        self.consider_neighbors = consider_neighbors
        self.dim_w = n_components
        self.dim_mu = n_components * n_vars
        self.dim_D = n_components * n_vars
        self.dim_V = n_components * n_vars * n_rank
        self.output_dim = self.dim_w + self.dim_mu + self.dim_D + self.dim_V

    def _stats(self, features, x):
        return _mdn_stats(features['w'][..., 0], features['mu'],
                          features['D'], features['V'], x)

    def forward(self, features, y):
        B = y.shape[0]
        K, D = self.n_components, self.n_vars
        target = y[:, :, self.pred_len - 1]
        lp, reg_sum, mse_b = self._stats(features, target)

        nll_loss = -jnp.mean(lp)
        if self.consider_neighbors:
            lp_m, _, _ = self._stats(features, y[:, :, self.pred_len - 2])
            lp_p, _, _ = self._stats(features, y[:, :, self.pred_len])
            nll_loss = -jnp.mean(lp_m) - jnp.mean(lp_p)

        reg_loss = jnp.sum(reg_sum) / (B * K * D * (D - 1))
        mse_loss = jnp.mean(mse_b)
        loss = nll_loss + reg_loss * self.reg_coef + mse_loss * 100.0
        # Return device arrays (no forced device->host sync); call float() at
        # the caller only if host scalars are actually required.
        return loss, nll_loss, reg_loss, mse_loss

    # TODO(synk): dist.sample() (ancestral sampling from the mixture) is not
    # part of forward() and is not implemented in the kernel.


def _reference(features, y, pred_len, reg_coef):
    """Pure-jnp reference of the PyTorch distributions math (for validation)."""
    w = features['w'][..., 0]
    mu, dd, v = features['mu'], features['D'], features['V']
    B, K, D = mu.shape
    R = v.shape[-1]
    x = y[:, :, pred_len - 1]
    wn = w / jnp.sum(w, axis=-1, keepdims=True)
    log_w = jnp.log(wn)
    d_inv = 1.0 / dd
    cap = jnp.eye(R) + jnp.einsum('bkdi,bkd,bkdj->bkij', v, d_inv, v)
    cap_inv = jnp.linalg.inv(cap)
    diff = x[:, None, :] - mu
    t = jnp.einsum('bkdi,bkd->bki', v, d_inv * diff)
    maha = (jnp.sum(diff * diff * d_inv, -1)
            - jnp.einsum('bki,bkij,bkj->bk', t, cap_inv, t))
    logdet = jnp.linalg.slogdet(cap)[1] + jnp.sum(jnp.log(dd), -1)
    comp_lp = -0.5 * (D * jnp.log(2.0 * jnp.pi) + logdet + maha)
    lp = jax.nn.logsumexp(log_w + comp_lp, axis=-1)
    nll = -jnp.mean(lp)
    dinv_v = d_inv[..., :, None] * v
    corr = jnp.einsum('bkar,bkrs,bkcs->bkac', dinv_v, cap_inv, dinv_v)
    prec = d_inv[..., :, None] * jnp.eye(D) - corr
    mask = 1.0 - jnp.eye(D)
    reg = jnp.sum(jnp.abs(prec) * mask) / (B * K * D * (D - 1))
    mean = jnp.einsum('bk,bkd->bd', wn, mu)
    mse = jnp.mean(jnp.mean((mean - x) ** 2, axis=1))
    loss = nll + reg * reg_coef + mse * 100
    return loss, nll, reg, mse


if __name__ == "__main__":
    B, K, D, R, pred_len = 5, 4, 8, 2, 12
    key = jax.random.PRNGKey(0)
    kw, kmu, kd, kv, ky = jax.random.split(key, 5)

    features = {
        'w': jax.nn.softplus(jax.random.normal(kw, (B, K, 1), jnp.float32)) + 0.1,
        'mu': 0.5 * jax.random.normal(kmu, (B, K, D), jnp.float32),
        'D': jax.nn.softplus(jax.random.normal(kd, (B, K, D), jnp.float32)) + 0.5,
        'V': 0.3 * jax.random.normal(kv, (B, K, D, R), jnp.float32),
    }
    y = jax.random.normal(ky, (B, D, pred_len), jnp.float32)

    head = LowRankMDNhead(n_components=K, n_vars=D, n_rank=R,
                          pred_len=pred_len, reg_coef=0.1)
    loss, nll, reg, mse = head.forward(features, y)
    jax.block_until_ready(loss)

    ref_loss, ref_nll, ref_reg, ref_mse = _reference(features, y, pred_len, 0.1)

    def _close(a, b):
        a, b = float(a), float(b)
        return abs(a - b) <= 2e-3 + 2e-3 * abs(b)

    assert _close(loss, ref_loss), (float(loss), float(ref_loss))
    assert _close(nll, ref_nll), (float(nll), float(ref_nll))
    assert _close(reg, ref_reg), (float(reg), float(ref_reg))
    assert _close(mse, ref_mse), (float(mse), float(ref_mse))

    print("KERNEL_OK")
</pallas_src>

<mosaic_0001>
module attributes {stable_mosaic.version = 11 : i64} {
  func.func @_mdn_head_kernel(%arg0: i32, %arg1: memref<4x128xf32, #tpu.memory_space<vmem>>, %arg2: memref<4x8x128xf32, #tpu.memory_space<vmem>>, %arg3: memref<4x8x128xf32, #tpu.memory_space<vmem>>, %arg4: memref<4x2x8x128xf32, #tpu.memory_space<vmem>>, %arg5: memref<8x128xf32, #tpu.memory_space<vmem>>, %arg6: memref<3x128xf32, #tpu.memory_space<vmem>>, %arg7: memref<4x128xf32, #tpu.memory_space<vmem>>) attributes {dimension_semantics = [#tpu.dimension_semantics<parallel>], iteration_bounds = array<i64: 1>, scalar_prefetch = 0 : i64, scratch_operands = 1 : i64, tpu.core_type = #tpu.core_type<tc>, window_params = [{transform_indices = @transform_0, window_bounds = array<i64: 4, 128>}, {transform_indices = @transform_1, window_bounds = array<i64: 4, 8, 128>}, {transform_indices = @transform_2, window_bounds = array<i64: 4, 8, 128>}, {transform_indices = @transform_3, window_bounds = array<i64: 4, 2, 8, 128>}, {transform_indices = @transform_4, window_bounds = array<i64: 8, 128>}, {transform_indices = @transform_5, window_bounds = array<i64: 3, 128>}]} {
    %c0 = arith.constant 0 : index
    %c0_0 = arith.constant 0 : index
    %0 = vector.load %arg5[%c0, %c0_0] : memref<8x128xf32, #tpu.memory_space<vmem>>, vector<8x128xf32>
    %c0_1 = arith.constant 0 : index
    %c0_2 = arith.constant 0 : index
    %1 = vector.load %arg1[%c0_1, %c0_2] : memref<4x128xf32, #tpu.memory_space<vmem>>, vector<4x128xf32>
    %cst = arith.constant dense<0.000000e+00> : vector<128xf32>
    %2 = vector.multi_reduction <add>, %1, %cst [0] : vector<4x128xf32> to vector<128xf32>
    %3 = vector.shape_cast %2 : vector<128xf32> to vector<1x128xf32>
    %4 = tpu.reciprocal %3 : vector<1x128xf32> -> vector<1x128xf32>
    %5 = math.log %1 : vector<4x128xf32>
    %6 = math.log %3 : vector<1x128xf32>
    %7 = vector.broadcast %6 : vector<1x128xf32> to vector<4x128xf32>
    %8 = arith.subf %5, %7 : vector<4x128xf32>
    %9 = vector.broadcast %4 : vector<1x128xf32> to vector<4x128xf32>
    %10 = arith.mulf %1, %9 : vector<4x128xf32>
    %cst_3 = arith.constant 0.000000e+00 : f32
    %11 = vector.broadcast %cst_3 : f32 to vector<1x128xf32>
    %cst_4 = arith.constant 0.000000e+00 : f32
    %12 = vector.broadcast %cst_4 : f32 to vector<8x128xf32>
    %c0_5 = arith.constant 0 : index
    %c0_6 = arith.constant 0 : index
    %c0_7 = arith.constant 0 : index
    %13 = vector.load %arg3[%c0_5, %c0_6, %c0_7] : memref<4x8x128xf32, #tpu.memory_space<vmem>>, vector<1x8x128xf32>
    %14 = vector.shape_cast %13 : vector<1x8x128xf32> to vector<8x128xf32>
    %c0_8 = arith.constant 0 : index
    %c0_9 = arith.constant 0 : index
    %c0_10 = arith.constant 0 : index
    %15 = vector.load %arg2[%c0_8, %c0_9, %c0_10] : memref<4x8x128xf32, #tpu.memory_space<vmem>>, vector<1x8x128xf32>
    %16 = vector.shape_cast %15 : vector<1x8x128xf32> to vector<8x128xf32>
    %c0_11 = arith.constant 0 : index
    %c0_12 = arith.constant 0 : index
    %c0_13 = arith.constant 0 : index
    %c0_14 = arith.constant 0 : index
    %17 = vector.load %arg4[%c0_11, %c0_12, %c0_13, %c0_14] : memref<4x2x8x128xf32, #tpu.memory_space<vmem>>, vector<1x2x8x128xf32>
    %18 = vector.shape_cast %17 : vector<1x2x8x128xf32> to vector<2x8x128xf32>
    %19 = tpu.reciprocal %14 : vector<8x128xf32> -> vector<8x128xf32>
    %20 = arith.subf %0, %16 : vector<8x128xf32>
    %21 = vector.extract_strided_slice %18 {offsets = [0, 0, 0], sizes = [1, 8, 128], strides = [1, 1, 1]} : vector<2x8x128xf32> to vector<1x8x128xf32>
    %22 = vector.shape_cast %21 : vector<1x8x128xf32> to vector<8x128xf32>
    %23 = arith.mulf %22, %19 : vector<8x128xf32>
    %24 = vector.extract_strided_slice %18 {offsets = [1, 0, 0], sizes = [1, 8, 128], strides = [1, 1, 1]} : vector<2x8x128xf32> to vector<1x8x128xf32>
    %25 = vector.shape_cast %24 : vector<1x8x128xf32> to vector<8x128xf32>
    %26 = arith.mulf %25, %19 : vector<8x128xf32>
    %27 = vector.extract_strided_slice %18 {offsets = [0, 0, 0], sizes = [1, 8, 128], strides = [1, 1, 1]} : vector<2x8x128xf32> to vector<1x8x128xf32>
    %28 = vector.shape_cast %27 : vector<1x8x128xf32> to vector<8x128xf32>
    %29 = arith.mulf %23, %28 : vector<8x128xf32>
    %cst_15 = arith.constant dense<0.000000e+00> : vector<128xf32>
    %30 = vector.multi_reduction <add>, %29, %cst_15 [0] : vector<8x128xf32> to vector<128xf32>
    %31 = vector.shape_cast %30 : vector<128xf32> to vector<1x128xf32>
    %cst_16 = arith.constant 1.000000e+00 : f32
    %32 = vector.broadcast %cst_16 : f32 to vector<1x128xf32>
    %33 = arith.addf %31, %32 : vector<1x128xf32>
    %34 = vector.extract_strided_slice %18 {offsets = [0, 0, 0], sizes = [1, 8, 128], strides = [1, 1, 1]} : vector<2x8x128xf32> to vector<1x8x128xf32>
    %35 = vector.shape_cast %34 : vector<1x8x128xf32> to vector<8x128xf32>
    %36 = arith.mulf %26, %35 : vector<8x128xf32>
    %cst_17 = arith.constant dense<0.000000e+00> : vector<128xf32>
    %37 = vector.multi_reduction <add>, %36, %cst_17 [0] : vector<8x128xf32> to vector<128xf32>
    %38 = vector.shape_cast %37 : vector<128xf32> to vector<1x128xf32>
    %39 = vector.extract_strided_slice %18 {offsets = [1, 0, 0], sizes = [1, 8, 128], strides = [1, 1, 1]} : vector<2x8x128xf32> to vector<1x8x128xf32>
    %40 = vector.shape_cast %39 : vector<1x8x128xf32> to vector<8x128xf32>
    %41 = arith.mulf %26, %40 : vector<8x128xf32>
    %cst_18 = arith.constant dense<0.000000e+00> : vector<128xf32>
    %42 = vector.multi_reduction <add>, %41, %cst_18 [0] : vector<8x128xf32> to vector<128xf32>
    %43 = vector.shape_cast %42 : vector<128xf32> to vector<1x128xf32>
    %cst_19 = arith.constant 1.000000e+00 : f32
    %44 = vector.broadcast %cst_19 : f32 to vector<1x128xf32>
    %45 = arith.addf %43, %44 : vector<1x128xf32>
    %cst_20 = arith.constant 0.000000e+00 : f32
    %46 = vector.broadcast %cst_20 : f32 to vector<1x128xf32>
    %47 = math.log %33 : vector<1x128xf32>
    %48 = arith.addf %46, %47 : vector<1x128xf32>
    %49 = tpu.reciprocal %33 : vector<1x128xf32> -> vector<1x128xf32>
    %50 = arith.mulf %38, %49 : vector<1x128xf32>
    %51 = vector.broadcast %49 : vector<1x128xf32> to vector<8x128xf32>
    %52 = arith.mulf %23, %51 : vector<8x128xf32>
    %53 = arith.mulf %38, %50 : vector<1x128xf32>
    %54 = arith.subf %45, %53 : vector<1x128xf32>
    %55 = vector.broadcast %38 : vector<1x128xf32> to vector<8x128xf32>
    %56 = arith.mulf %55, %52 : vector<8x128xf32>
    %57 = arith.subf %26, %56 : vector<8x128xf32>
    %58 = math.log %54 : vector<1x128xf32>
    %59 = arith.addf %48, %58 : vector<1x128xf32>
    %60 = tpu.reciprocal %54 : vector<1x128xf32> -> vector<1x128xf32>
    %61 = vector.broadcast %60 : vector<1x128xf32> to vector<8x128xf32>
    %62 = arith.mulf %57, %61 : vector<8x128xf32>
    %63 = vector.broadcast %50 : vector<1x128xf32> to vector<8x128xf32>
    %64 = arith.mulf %63, %62 : vector<8x128xf32>
    %65 = arith.subf %52, %64 : vector<8x128xf32>
    %66 = arith.mulf %20, %20 : vector<8x128xf32>
    %67 = arith.mulf %66, %19 : vector<8x128xf32>
    %cst_21 = arith.constant dense<0.000000e+00> : vector<128xf32>
    %68 = vector.multi_reduction <add>, %67, %cst_21 [0] : vector<8x128xf32> to vector<128xf32>
    %69 = vector.shape_cast %68 : vector<128xf32> to vector<1x128xf32>
    %cst_22 = arith.constant 0.000000e+00 : f32
    %70 = vector.broadcast %cst_22 : f32 to vector<1x128xf32>
    %71 = arith.mulf %23, %20 : vector<8x128xf32>
    %cst_23 = arith.constant dense<0.000000e+00> : vector<128xf32>
    %72 = vector.multi_reduction <add>, %71, %cst_23 [0] : vector<8x128xf32> to vector<128xf32>
    %73 = vector.shape_cast %72 : vector<128xf32> to vector<1x128xf32>
    %74 = arith.mulf %65, %20 : vector<8x128xf32>
    %cst_24 = arith.constant dense<0.000000e+00> : vector<128xf32>
    %75 = vector.multi_reduction <add>, %74, %cst_24 [0] : vector<8x128xf32> to vector<128xf32>
    %76 = vector.shape_cast %75 : vector<128xf32> to vector<1x128xf32>
    %77 = arith.mulf %73, %76 : vector<1x128xf32>
    %78 = arith.addf %70, %77 : vector<1x128xf32>
    %79 = arith.mulf %26, %20 : vector<8x128xf32>
    %cst_25 = arith.constant dense<0.000000e+00> : vector<128xf32>
    %80 = vector.multi_reduction <add>, %79, %cst_25 [0] : vector<8x128xf32> to vector<128xf32>
    %81 = vector.shape_cast %80 : vector<128xf32> to vector<1x128xf32>
    %82 = arith.mulf %62, %20 : vector<8x128xf32>
    %cst_26 = arith.constant dense<0.000000e+00> : vector<128xf32>
    %83 = vector.multi_reduction <add>, %82, %cst_26 [0] : vector<8x128xf32> to vector<128xf32>
    %84 = vector.shape_cast %83 : vector<128xf32> to vector<1x128xf32>
    %85 = arith.mulf %81, %84 : vector<1x128xf32>
    %86 = arith.addf %78, %85 : vector<1x128xf32>
    %87 = arith.subf %69, %86 : vector<1x128xf32>
    %88 = math.log %14 : vector<8x128xf32>
    %cst_27 = arith.constant dense<0.000000e+00> : vector<128xf32>
    %89 = vector.multi_reduction <add>, %88, %cst_27 [0] : vector<8x128xf32> to vector<128xf32>
    %90 = vector.shape_cast %89 : vector<128xf32> to vector<1x128xf32>
    %91 = arith.addf %59, %90 : vector<1x128xf32>
    %cst_28 = arith.constant 14.7030163 : f32
    %92 = vector.broadcast %cst_28 : f32 to vector<1x128xf32>
    %93 = arith.addf %92, %91 : vector<1x128xf32>
    %94 = arith.addf %93, %87 : vector<1x128xf32>
    %cst_29 = arith.constant -5.000000e-01 : f32
    %95 = vector.broadcast %cst_29 : f32 to vector<1x128xf32>
    %96 = arith.mulf %95, %94 : vector<1x128xf32>
    %97 = vector.extract_strided_slice %8 {offsets = [0, 0], sizes = [1, 128], strides = [1, 1]} : vector<4x128xf32> to vector<1x128xf32>
    %98 = arith.addf %97, %96 : vector<1x128xf32>
    %c0_30 = arith.constant 0 : index
    %c0_31 = arith.constant 0 : index
    %99 = vector.load %arg7[%c0_30, %c0_31] : memref<4x128xf32, #tpu.memory_space<vmem>>, vector<1x128xf32>
    tpu.vector_store %arg7[%c0_30, %c0_31], %98 {strides = array<i32>} : memref<4x128xf32, #tpu.memory_space<vmem>>, vector<1x128xf32>,
    %100 = vector.extract_strided_slice %23 {offsets = [0, 0], sizes = [1, 128], strides = [1, 1]} : vector<8x128xf32> to vector<1x128xf32>
    %101 = vector.broadcast %100 : vector<1x128xf32> to vector<8x128xf32>
    %102 = arith.mulf %101, %65 : vector<8x128xf32>
    %103 = vector.extract_strided_slice %26 {offsets = [0, 0], sizes = [1, 128], strides = [1, 1]} : vector<8x128xf32> to vector<1x128xf32>
    %104 = vector.broadcast %103 : vector<1x128xf32> to vector<8x128xf32>
    %105 = arith.mulf %104, %62 : vector<8x128xf32>
    %106 = arith.addf %102, %105 : vector<8x128xf32>
    %107 = math.absf %106 : vector<8x128xf32>
    %cst_32 = arith.constant dense<0.000000e+00> : vector<128xf32>
    %108 = vector.multi_reduction <add>, %107, %cst_32 [0] : vector<8x128xf32> to vector<128xf32>
    %109 = vector.shape_cast %108 : vector<128xf32> to vector<1x128xf32>
    %110 = vector.extract_strided_slice %107 {offsets = [0, 0], sizes = [1, 128], strides = [1, 1]} : vector<8x128xf32> to vector<1x128xf32>
    %111 = arith.subf %109, %110 : vector<1x128xf32>
    %112 = arith.addf %11, %111 : vector<1x128xf32>
    %113 = vector.extract_strided_slice %23 {offsets = [1, 0], sizes = [1, 128], strides = [1, 1]} : vector<8x128xf32> to vector<1x128xf32>
    %114 = vector.broadcast %113 : vector<1x128xf32> to vector<8x128xf32>
    %115 = arith.mulf %114, %65 : vector<8x128xf32>
    %116 = vector.extract_strided_slice %26 {offsets = [1, 0], sizes = [1, 128], strides = [1, 1]} : vector<8x128xf32> to vector<1x128xf32>
    %117 = vector.broadcast %116 : vector<1x128xf32> to vector<8x128xf32>
    %118 = arith.mulf %117, %62 : vector<8x128xf32>
    %119 = arith.addf %115, %118 : vector<8x128xf32>
    %120 = math.absf %119 : vector<8x128xf32>
    %cst_33 = arith.constant dense<0.000000e+00> : vector<128xf32>
    %121 = vector.multi_reduction <add>, %120, %cst_33 [0] : vector<8x128xf32> to vector<128xf32>
    %122 = vector.shape_cast %121 : vector<128xf32> to vector<1x128xf32>
    %123 = vector.extract_strided_slice %120 {offsets = [1, 0], sizes = [1, 128], strides = [1, 1]} : vector<8x128xf32> to vector<1x128xf32>
    %124 = arith.subf %122, %123 : vector<1x128xf32>
    %125 = arith.addf %112, %124 : vector<1x128xf32>
    %126 = vector.extract_strided_slice %23 {offsets = [2, 0], sizes = [1, 128], strides = [1, 1]} : vector<8x128xf32> to vector<1x128xf32>
    %127 = vector.broadcast %126 : vector<1x128xf32> to vector<8x128xf32>
    %128 = arith.mulf %127, %65 : vector<8x128xf32>
    %129 = vector.extract_strided_slice %26 {offsets = [2, 0], sizes = [1, 128], strides = [1, 1]} : vector<8x128xf32> to vector<1x128xf32>
    %130 = vector.broadcast %129 : vector<1x128xf32> to vector<8x128xf32>
    %131 = arith.mulf %130, %62 : vector<8x128xf32>
    %132 = arith.addf %128, %131 : vector<8x128xf32>
    %133 = math.absf %132 : vector<8x128xf32>
    %cst_34 = arith.constant dense<0.000000e+00> : vector<128xf32>
    %134 = vector.multi_reduction <add>, %133, %cst_34 [0] : vector<8x128xf32> to vector<128xf32>
    %135 = vector.shape_cast %134 : vector<128xf32> to vector<1x128xf32>
    %136 = vector.extract_strided_slice %133 {offsets = [2, 0], sizes = [1, 128], strides = [1, 1]} : vector<8x128xf32> to vector<1x128xf32>
    %137 = arith.subf %135, %136 : vector<1x128xf32>
    %138 = arith.addf %125, %137 : vector<1x128xf32>
    %139 = vector.extract_strided_slice %23 {offsets = [3, 0], sizes = [1, 128], strides = [1, 1]} : vector<8x128xf32> to vector<1x128xf32>
    %140 = vector.broadcast %139 : vector<1x128xf32> to vector<8x128xf32>
    %141 = arith.mulf %140, %65 : vector<8x128xf32>
    %142 = vector.extract_strided_slice %26 {offsets = [3, 0], sizes = [1, 128], strides = [1, 1]} : vector<8x128xf32> to vector<1x128xf32>
    %143 = vector.broadcast %142 : vector<1x128xf32> to vector<8x128xf32>
    %144 = arith.mulf %143, %62 : vector<8x128xf32>
    %145 = arith.addf %141, %144 : vector<8x128xf32>
    %146 = math.absf %145 : vector<8x128xf32>
    %cst_35 = arith.constant dense<0.000000e+00> : vector<128xf32>
    %147 = vector.multi_reduction <add>, %146, %cst_35 [0] : vector<8x128xf32> to vector<128xf32>
    %148 = vector.shape_cast %147 : vector<128xf32> to vector<1x128xf32>
    %149 = vector.extract_strided_slice %146 {offsets = [3, 0], sizes = [1, 128], strides = [1, 1]} : vector<8x128xf32> to vector<1x128xf32>
    %150 = arith.subf %148, %149 : vector<1x128xf32>
    %151 = arith.addf %138, %150 : vector<1x128xf32>
    %152 = vector.extract_strided_slice %23 {offsets = [4, 0], sizes = [1, 128], strides = [1, 1]} : vector<8x128xf32> to vector<1x128xf32>
    %153 = vector.broadcast %152 : vector<1x128xf32> to vector<8x128xf32>
    %154 = arith.mulf %153, %65 : vector<8x128xf32>
    %155 = vector.extract_strided_slice %26 {offsets = [4, 0], sizes = [1, 128], strides = [1, 1]} : vector<8x128xf32> to vector<1x128xf32>
    %156 = vector.broadcast %155 : vector<1x128xf32> to vector<8x128xf32>
    %157 = arith.mulf %156, %62 : vector<8x128xf32>
    %158 = arith.addf %154, %157 : vector<8x128xf32>
    %159 = math.absf %158 : vector<8x128xf32>
    %cst_36 = arith.constant dense<0.000000e+00> : vector<128xf32>
    %160 = vector.multi_reduction <add>, %159, %cst_36 [0] : vector<8x128xf32> to vector<128xf32>
    %161 = vector.shape_cast %160 : vector<128xf32> to vector<1x128xf32>
    %162 = vector.extract_strided_slice %159 {offsets = [4, 0], sizes = [1, 128], strides = [1, 1]} : vector<8x128xf32> to vector<1x128xf32>
    %163 = arith.subf %161, %162 : vector<1x128xf32>
    %164 = arith.addf %151, %163 : vector<1x128xf32>
    %165 = vector.extract_strided_slice %23 {offsets = [5, 0], sizes = [1, 128], strides = [1, 1]} : vector<8x128xf32> to vector<1x128xf32>
    %166 = vector.broadcast %165 : vector<1x128xf32> to vector<8x128xf32>
    %167 = arith.mulf %166, %65 : vector<8x128xf32>
    %168 = vector.extract_strided_slice %26 {offsets = [5, 0], sizes = [1, 128], strides = [1, 1]} : vector<8x128xf32> to vector<1x128xf32>
    %169 = vector.broadcast %168 : vector<1x128xf32> to vector<8x128xf32>
    %170 = arith.mulf %169, %62 : vector<8x128xf32>
    %171 = arith.addf %167, %170 : vector<8x128xf32>
    %172 = math.absf %171 : vector<8x128xf32>
    %cst_37 = arith.constant dense<0.000000e+00> : vector<128xf32>
    %173 = vector.multi_reduction <add>, %172, %cst_37 [0] : vector<8x128xf32> to vector<128xf32>
    %174 = vector.shape_cast %173 : vector<128xf32> to vector<1x128xf32>
    %175 = vector.extract_strided_slice %172 {offsets = [5, 0], sizes = [1, 128], strides = [1, 1]} : vector<8x128xf32> to vector<1x128xf32>
    %176 = arith.subf %174, %175 : vector<1x128xf32>
    %177 = arith.addf %164, %176 : vector<1x128xf32>
    %178 = vector.extract_strided_slice %23 {offsets = [6, 0], sizes = [1, 128], strides = [1, 1]} : vector<8x128xf32> to vector<1x128xf32>
    %179 = vector.broadcast %178 : vector<1x128xf32> to vector<8x128xf32>
    %180 = arith.mulf %179, %65 : vector<8x128xf32>
    %181 = vector.extract_strided_slice %26 {offsets = [6, 0], sizes = [1, 128], strides = [1, 1]} : vector<8x128xf32> to vector<1x128xf32>
    %182 = vector.broadcast %181 : vector<1x128xf32> to vector<8x128xf32>
    %183 = arith.mulf %182, %62 : vector<8x128xf32>
    %184 = arith.addf %180, %183 : vector<8x128xf32>
    %185 = math.absf %184 : vector<8x128xf32>
    %cst_38 = arith.constant dense<0.000000e+00> : vector<128xf32>
    %186 = vector.multi_reduction <add>, %185, %cst_38 [0] : vector<8x128xf32> to vector<128xf32>
    %187 = vector.shape_cast %186 : vector<128xf32> to vector<1x128xf32>
    %188 = vector.extract_strided_slice %185 {offsets = [6, 0], sizes = [1, 128], strides = [1, 1]} : vector<8x128xf32> to vector<1x128xf32>
    %189 = arith.subf %187, %188 : vector<1x128xf32>
    %190 = arith.addf %177, %189 : vector<1x128xf32>
    %191 = vector.extract_strided_slice %23 {offsets = [7, 0], sizes = [1, 128], strides = [1, 1]} : vector<8x128xf32> to vector<1x128xf32>
    %192 = vector.broadcast %191 : vector<1x128xf32> to vector<8x128xf32>
    %193 = arith.mulf %192, %65 : vector<8x128xf32>
    %194 = vector.extract_strided_slice %26 {offsets = [7, 0], sizes = [1, 128], strides = [1, 1]} : vector<8x128xf32> to vector<1x128xf32>
    %195 = vector.broadcast %194 : vector<1x128xf32> to vector<8x128xf32>
    %196 = arith.mulf %195, %62 : vector<8x128xf32>
    %197 = arith.addf %193, %196 : vector<8x128xf32>
    %198 = math.absf %197 : vector<8x128xf32>
    %cst_39 = arith.constant dense<0.000000e+00> : vector<128xf32>
    %199 = vector.multi_reduction <add>, %198, %cst_39 [0] : vector<8x128xf32> to vector<128xf32>
    %200 = vector.shape_cast %199 : vector<128xf32> to vector<1x128xf32>
    %201 = vector.extract_strided_slice %198 {offsets = [7, 0], sizes = [1, 128], strides = [1, 1]} : vector<8x128xf32> to vector<1x128xf32>
    %202 = arith.subf %200, %201 : vector<1x128xf32>
    %203 = arith.addf %190, %202 : vector<1x128xf32>
    %204 = vector.extract_strided_slice %10 {offsets = [0, 0], sizes = [1, 128], strides = [1, 1]} : vector<4x128xf32> to vector<1x128xf32>
    %205 = vector.broadcast %204 : vector<1x128xf32> to vector<8x128xf32>
    %206 = arith.mulf %205, %16 : vector<8x128xf32>
    %207 = arith.addf %12, %206 : vector<8x128xf32>
    %c1 = arith.constant 1 : index
    %c0_40 = arith.constant 0 : index
    %c0_41 = arith.constant 0 : index
    %208 = vector.load %arg3[%c1, %c0_40, %c0_41] : memref<4x8x128xf32, #tpu.memory_space<vmem>>, vector<1x8x128xf32>
    %209 = vector.shape_cast %208 : vector<1x8x128xf32> to vector<8x128xf32>
    %c1_42 = arith.constant 1 : index
    %c0_43 = arith.constant 0 : index
    %c0_44 = arith.constant 0 : index
    %210 = vector.load %arg2[%c1_42, %c0_43, %c0_44] : memref<4x8x128xf32, #tpu.memory_space<vmem>>, vector<1x8x128xf32>
    %211 = vector.shape_cast %210 : vector<1x8x128xf32> to vector<8x128xf32>
    %c1_45 = arith.constant 1 : index
    %c0_46 = arith.constant 0 : index
    %c0_47 = arith.constant 0 : index
    %c0_48 = arith.constant 0 : index
    %212 = vector.load %arg4[%c1_45, %c0_46, %c0_47, %c0_48] : memref<4x2x8x128xf32, #tpu.memory_space<vmem>>, vector<1x2x8x128xf32>
    %213 = vector.shape_cast %212 : vector<1x2x8x128xf32> to vector<2x8x128xf32>
    %214 = tpu.reciprocal %209 : vector<8x128xf32> -> vector<8x128xf32>
    %215 = arith.subf %0, %211 : vector<8x128xf32>
    %216 = vector.extract_strided_slice %213 {offsets = [0, 0, 0], sizes = [1, 8, 128], strides = [1, 1, 1]} : vector<2x8x128xf32> to vector<1x8x128xf32>
    %217 = vector.shape_cast %216 : vector<1x8x128xf32> to vector<8x128xf32>
    %218 = arith.mulf %217, %214 : vector<8x128xf32>
    %219 = vector.extract_strided_slice %213 {offsets = [1, 0, 0], sizes = [1, 8, 128], strides = [1, 1, 1]} : vector<2x8x128xf32> to vector<1x8x128xf32>
    %220 = vector.shape_cast %219 : vector<1x8x128xf32> to vector<8x128xf32>
    %221 = arith.mulf %220, %214 : vector<8x128xf32>
    %222 = vector.extract_strided_slice %213 {offsets = [0, 0, 0], sizes = [1, 8, 128], strides = [1, 1, 1]} : vector<2x8x128xf32> to vector<1x8x128xf32>
    %223 = vector.shape_cast %222 : vector<1x8x128xf32> to vector<8x128xf32>
    %224 = arith.mulf %218, %223 : vector<8x128xf32>
    %cst_49 = arith.constant dense<0.000000e+00> : vector<128xf32>
    %225 = vector.multi_reduction <add>, %224, %cst_49 [0] : vector<8x128xf32> to vector<128xf32>
    %226 = vector.shape_cast %225 : vector<128xf32> to vector<1x128xf32>
    %cst_50 = arith.constant 1.000000e+00 : f32
    %227 = vector.broadcast %cst_50 : f32 to vector<1x128xf32>
    %228 = arith.addf %226, %227 : vector<1x128xf32>
    %229 = vector.extract_strided_slice %213 {offsets = [0, 0, 0], sizes = [1, 8, 128], strides = [1, 1, 1]} : vector<2x8x128xf32> to vector<1x8x128xf32>
    %230 = vector.shape_cast %229 : vector<1x8x128xf32> to vector<8x128xf32>
    %231 = arith.mulf %221, %230 : vector<8x128xf32>
    %cst_51 = arith.constant dense<0.000000e+00> : vector<128xf32>
    %232 = vector.multi_reduction <add>, %231, %cst_51 [0] : vector<8x128xf32> to vector<128xf32>
    %233 = vector.shape_cast %232 : vector<128xf32> to vector<1x128xf32>
    %234 = vector.extract_strided_slice %213 {offsets = [1, 0, 0], sizes = [1, 8, 128], strides = [1, 1, 1]} : vector<2x8x128xf32> to vector<1x8x128xf32>
    %235 = vector.shape_cast %234 : vector<1x8x128xf32> to vector<8x128xf32>
    %236 = arith.mulf %221, %235 : vector<8x128xf32>
    %cst_52 = arith.constant dense<0.000000e+00> : vector<128xf32>
    %237 = vector.multi_reduction <add>, %236, %cst_52 [0] : vector<8x128xf32> to vector<128xf32>
    %238 = vector.shape_cast %237 : vector<128xf32> to vector<1x128xf32>
    %cst_53 = arith.constant 1.000000e+00 : f32
    %239 = vector.broadcast %cst_53 : f32 to vector<1x128xf32>
    %240 = arith.addf %238, %239 : vector<1x128xf32>
    %cst_54 = arith.constant 0.000000e+00 : f32
    %241 = vector.broadcast %cst_54 : f32 to vector<1x128xf32>
    %242 = math.log %228 : vector<1x128xf32>
    %243 = arith.addf %241, %242 : vector<1x128xf32>
    %244 = tpu.reciprocal %228 : vector<1x128xf32> -> vector<1x128xf32>
    %245 = arith.mulf %233, %244 : vector<1x128xf32>
    %246 = vector.broadcast %244 : vector<1x128xf32> to vector<8x128xf32>
    %247 = arith.mulf %218, %246 : vector<8x128xf32>
    %248 = arith.mulf %233, %245 : vector<1x128xf32>
    %249 = arith.subf %240, %248 : vector<1x128xf32>
    %250 = vector.broadcast %233 : vector<1x128xf32> to vector<8x128xf32>
    %251 = arith.mulf %250, %247 : vector<8x128xf32>
    %252 = arith.subf %221, %251 : vector<8x128xf32>
    %253 = math.log %249 : vector<1x128xf32>
    %254 = arith.addf %243, %253 : vector<1x128xf32>
    %255 = tpu.reciprocal %249 : vector<1x128xf32> -> vector<1x128xf32>
    %256 = vector.broadcast %255 : vector<1x128xf32> to vector<8x128xf32>
    %257 = arith.mulf %252, %256 : vector<8x128xf32>
    %258 = vector.broadcast %245 : vector<1x128xf32> to vector<8x128xf32>
    %259 = arith.mulf %258, %257 : vector<8x128xf32>
    %260 = arith.subf %247, %259 : vector<8x128xf32>
    %261 = arith.mulf %215, %215 : vector<8x128xf32>
    %262 = arith.mulf %261, %214 : vector<8x128xf32>
    %cst_55 = arith.constant dense<0.000000e+00> : vector<128xf32>
    %263 = vector.multi_reduction <add>, %262, %cst_55 [0] : vector<8x128xf32> to vector<128xf32>
    %264 = vector.shape_cast %263 : vector<128xf32> to vector<1x128xf32>
    %cst_56 = arith.constant 0.000000e+00 : f32
    %265 = vector.broadcast %cst_56 : f32 to vector<1x128xf32>
    %266 = arith.mulf %218, %215 : vector<8x128xf32>
    %cst_57 = arith.constant dense<0.000000e+00> : vector<128xf32>
    %267 = vector.multi_reduction <add>, %266, %cst_57 [0] : vector<8x128xf32> to vector<128xf32>
    %268 = vector.shape_cast %267 : vector<128xf32> to vector<1x128xf32>
    %269 = arith.mulf %260, %215 : vector<8x128xf32>
    %cst_58 = arith.constant dense<0.000000e+00> : vector<128xf32>
    %270 = vector.multi_reduction <add>, %269, %cst_58 [0] : vector<8x128xf32> to vector<128xf32>
    %271 = vector.shape_cast %270 : vector<128xf32> to vector<1x128xf32>
    %272 = arith.mulf %268, %271 : vector<1x128xf32>
    %273 = arith.addf %265, %272 : vector<1x128xf32>
    %274 = arith.mulf %221, %215 : vector<8x128xf32>
    %cst_59 = arith.constant dense<0.000000e+00> : vector<128xf32>
    %275 = vector.multi_reduction <add>, %274, %cst_59 [0] : vector<8x128xf32> to vector<128xf32>
    %276 = vector.shape_cast %275 : vector<128xf32> to vector<1x128xf32>
    %277 = arith.mulf %257, %215 : vector<8x128xf32>
    %cst_60 = arith.constant dense<0.000000e+00> : vector<128xf32>
    %278 = vector.multi_reduction <add>, %277, %cst_60 [0] : vector<8x128xf32> to vector<128xf32>
    %279 = vector.shape_cast %278 : vector<128xf32> to vector<1x128xf32>
    %280 = arith.mulf %276, %279 : vector<1x128xf32>
    %281 = arith.addf %273, %280 : vector<1x128xf32>
    %282 = arith.subf %264, %281 : vector<1x128xf32>
    %283 = math.log %209 : vector<8x128xf32>
    %cst_61 = arith.constant dense<0.000000e+00> : vector<128xf32>
    %284 = vector.multi_reduction <add>, %283, %cst_61 [0] : vector<8x128xf32> to vector<128xf32>
    %285 = vector.shape_cast %284 : vector<128xf32> to vector<1x128xf32>
    %286 = arith.addf %254, %285 : vector<1x128xf32>
    %cst_62 = arith.constant 14.7030163 : f32
    %287 = vector.broadcast %cst_62 : f32 to vector<1x128xf32>
    %288 = arith.addf %287, %286 : vector<1x128xf32>
    %289 = arith.addf %288, %282 : vector<1x128xf32>
    %cst_63 = arith.constant -5.000000e-01 : f32
    %290 = vector.broadcast %cst_63 : f32 to vector<1x128xf32>
    %291 = arith.mulf %290, %289 : vector<1x128xf32>
    %292 = vector.extract_strided_slice %8 {offsets = [1, 0], sizes = [1, 128], strides = [1, 1]} : vector<4x128xf32> to vector<1x128xf32>
    %293 = arith.addf %292, %291 : vector<1x128xf32>
    %c1_64 = arith.constant 1 : index
    %c0_65 = arith.constant 0 : index
    %294 = vector.load %arg7[%c1_64, %c0_65] : memref<4x128xf32, #tpu.memory_space<vmem>>, vector<1x128xf32>
    tpu.vector_store %arg7[%c1_64, %c0_65], %293 {strides = array<i32>} : memref<4x128xf32, #tpu.memory_space<vmem>>, vector<1x128xf32>,
    %295 = vector.extract_strided_slice %218 {offsets = [0, 0], sizes = [1, 128], strides = [1, 1]} : vector<8x128xf32> to vector<1x128xf32>
    %296 = vector.broadcast %295 : vector<1x128xf32> to vector<8x128xf32>
    %297 = arith.mulf %296, %260 : vector<8x128xf32>
    %298 = vector.extract_strided_slice %221 {offsets = [0, 0], sizes = [1, 128], strides = [1, 1]} : vector<8x128xf32> to vector<1x128xf32>
    %299 = vector.broadcast %298 : vector<1x128xf32> to vector<8x128xf32>
    %300 = arith.mulf %299, %257 : vector<8x128xf32>
    %301 = arith.addf %297, %300 : vector<8x128xf32>
    %302 = math.absf %301 : vector<8x128xf32>
    %cst_66 = arith.constant dense<0.000000e+00> : vector<128xf32>
    %303 = vector.multi_reduction <add>, %302, %cst_66 [0] : vector<8x128xf32> to vector<128xf32>
    %304 = vector.shape_cast %303 : vector<128xf32> to vector<1x128xf32>
    %305 = vector.extract_strided_slice %302 {offsets = [0, 0], sizes = [1, 128], strides = [1, 1]} : vector<8x128xf32> to vector<1x128xf32>
    %306 = arith.subf %304, %305 : vector<1x128xf32>
    %307 = arith.addf %203, %306 : vector<1x128xf32>
    %308 = vector.extract_strided_slice %218 {offsets = [1, 0], sizes = [1, 128], strides = [1, 1]} : vector<8x128xf32> to vector<1x128xf32>
    %309 = vector.broadcast %308 : vector<1x128xf32> to vector<8x128xf32>
    %310 = arith.mulf %309, %260 : vector<8x128xf32>
    %311 = vector.extract_strided_slice %221 {offsets = [1, 0], sizes = [1, 128], strides = [1, 1]} : vector<8x128xf32> to vector<1x128xf32>
    %312 = vector.broadcast %311 : vector<1x128xf32> to vector<8x128xf32>
    %313 = arith.mulf %312, %257 : vector<8x128xf32>
    %314 = arith.addf %310, %313 : vector<8x128xf32>
    %315 = math.absf %314 : vector<8x128xf32>
    %cst_67 = arith.constant dense<0.000000e+00> : vector<128xf32>
    %316 = vector.multi_reduction <add>, %315, %cst_67 [0] : vector<8x128xf32> to vector<128xf32>
    %317 = vector.shape_cast %316 : vector<128xf32> to vector<1x128xf32>
    %318 = vector.extract_strided_slice %315 {offsets = [1, 0], sizes = [1, 128], strides = [1, 1]} : vector<8x128xf32> to vector<1x128xf32>
    %319 = arith.subf %317, %318 : vector<1x128xf32>
    %320 = arith.addf %307, %319 : vector<1x128xf32>
    %321 = vector.extract_strided_slice %218 {offsets = [2, 0], sizes = [1, 128], strides = [1, 1]} : vector<8x128xf32> to vector<1x128xf32>
    %322 = vector.broadcast %321 : vector<1x128xf32> to vector<8x128xf32>
    %323 = arith.mulf %322, %260 : vector<8x128xf32>
    %324 = vector.extract_strided_slice %221 {offsets = [2, 0], sizes = [1, 128], strides = [1, 1]} : vector<8x128xf32> to vector<1x128xf32>
    %325 = vector.broadcast %324 : vector<1x128xf32> to vector<8x128xf32>
    %326 = arith.mulf %325, %257 : vector<8x128xf32>
    %327 = arith.addf %323, %326 : vector<8x128xf32>
    %328 = math.absf %327 : vector<8x128xf32>
    %cst_68 = arith.constant dense<0.000000e+00> : vector<128xf32>
    %329 = vector.multi_reduction <add>, %328, %cst_68 [0] : vector<8x128xf32> to vector<128xf32>
    %330 = vector.shape_cast %329 : vector<128xf32> to vector<1x128xf32>
    %331 = vector.extract_strided_slice %328 {offsets = [2, 0], sizes = [1, 128], strides = [1, 1]} : vector<8x128xf32> to vector<1x128xf32>
    %332 = arith.subf %330, %331 : vector<1x128xf32>
    %333 = arith.addf %320, %332 : vector<1x128xf32>
    %334 = vector.extract_strided_slice %218 {offsets = [3, 0], sizes = [1, 128], strides = [1, 1]} : vector<8x128xf32> to vector<1x128xf32>
    %335 = vector.broadcast %334 : vector<1x128xf32> to vector<8x128xf32>
    %336 = arith.mulf %335, %260 : vector<8x128xf32>
    %337 = vector.extract_strided_slice %221 {offsets = [3, 0], sizes = [1, 128], strides = [1, 1]} : vector<8x128xf32> to vector<1x128xf32>
    %338 = vector.broadcast %337 : vector<1x128xf32> to vector<8x128xf32>
    %339 = arith.mulf %338, %257 : vector<8x128xf32>
    %340 = arith.addf %336, %339 : vector<8x128xf32>
    %341 = math.absf %340 : vector<8x128xf32>
    %cst_69 = arith.constant dense<0.000000e+00> : vector<128xf32>
    %342 = vector.multi_reduction <add>, %341, %cst_69 [0] : vector<8x128xf32> to vector<128xf32>
    %343 = vector.shape_cast %342 : vector<128xf32> to vector<1x128xf32>
    %344 = vector.extract_strided_slice %341 {offsets = [3, 0], sizes = [1, 128], strides = [1, 1]} : vector<8x128xf32> to vector<1x128xf32>
    %345 = arith.subf %343, %344 : vector<1x128xf32>
    %346 = arith.addf %333, %345 : vector<1x128xf32>
    %347 = vector.extract_strided_slice %218 {offsets = [4, 0], sizes = [1, 128], strides = [1, 1]} : vector<8x128xf32> to vector<1x128xf32>
    %348 = vector.broadcast %347 : vector<1x128xf32> to vector<8x128xf32>
    %349 = arith.mulf %348, %260 : vector<8x128xf32>
    %350 = vector.extract_strided_slice %221 {offsets = [4, 0], sizes = [1, 128], strides = [1, 1]} : vector<8x128xf32> to vector<1x128xf32>
    %351 = vector.broadcast %350 : vector<1x128xf32> to vector<8x128xf32>
    %352 = arith.mulf %351, %257 : vector<8x128xf32>
    %353 = arith.addf %349, %352 : vector<8x128xf32>
    %354 = math.absf %353 : vector<8x128xf32>
    %cst_70 = arith.constant dense<0.000000e+00> : vector<128xf32>
    %355 = vector.multi_reduction <add>, %354, %cst_70 [0] : vector<8x128xf32> to vector<128xf32>
    %356 = vector.shape_cast %355 : vector<128xf32> to vector<1x128xf32>
    %357 = vector.extract_strided_slice %354 {offsets = [4, 0], sizes = [1, 128], strides = [1, 1]} : vector<8x128xf32> to vector<1x128xf32>
    %358 = arith.subf %356, %357 : vector<1x128xf32>
    %359 = arith.addf %346, %358 : vector<1x128xf32>
    %360 = vector.extract_strided_slice %218 {offsets = [5, 0], sizes = [1, 128], strides = [1, 1]} : vector<8x128xf32> to vector<1x128xf32>
    %361 = vector.broadcast %360 : vector<1x128xf32> to vector<8x128xf32>
    %362 = arith.mulf %361, %260 : vector<8x128xf32>
    %363 = vector.extract_strided_slice %221 {offsets = [5, 0], sizes = [1, 128], strides = [1, 1]} : vector<8x128xf32> to vector<1x128xf32>
    %364 = vector.broadcast %363 : vector<1x128xf32> to vector<8x128xf32>
    %365 = arith.mulf %364, %257 : vector<8x128xf32>
    %366 = arith.addf %362, %365 : vector<8x128xf32>
    %367 = math.absf %366 : vector<8x128xf32>
    %cst_71 = arith.constant dense<0.000000e+00> : vector<128xf32>
    %368 = vector.multi_reduction <add>, %367, %cst_71 [0] : vector<8x128xf32> to vector<128xf32>
    %369 = vector.shape_cast %368 : vector<128xf32> to vector<1x128xf32>
    %370 = vector.extract_strided_slice %367 {offsets = [5, 0], sizes = [1, 128], strides = [1, 1]} : vector<8x128xf32> to vector<1x128xf32>
    %371 = arith.subf %369, %370 : vector<1x128xf32>
    %372 = arith.addf %359, %371 : vector<1x128xf32>
    %373 = vector.extract_strided_slice %218 {offsets = [6, 0], sizes = [1, 128], strides = [1, 1]} : vector<8x128xf32> to vector<1x128xf32>
    %374 = vector.broadcast %373 : vector<1x128xf32> to vector<8x128xf32>
    %375 = arith.mulf %374, %260 : vector<8x128xf32>
    %376 = vector.extract_strided_slice %221 {offsets = [6, 0], sizes = [1, 128], strides = [1, 1]} : vector<8x128xf32> to vector<1x128xf32>
    %377 = vector.broadcast %376 : vector<1x128xf32> to vector<8x128xf32>
    %378 = arith.mulf %377, %257 : vector<8x128xf32>
    %379 = arith.addf %375, %378 : vector<8x128xf32>
    %380 = math.absf %379 : vector<8x128xf32>
    %cst_72 = arith.constant dense<0.000000e+00> : vector<128xf32>
    %381 = vector.multi_reduction <add>, %380, %cst_72 [0] : vector<8x128xf32> to vector<128xf32>
    %382 = vector.shape_cast %381 : vector<128xf32> to vector<1x128xf32>
    %383 = vector.extract_strided_slice %380 {offsets = [6, 0], sizes = [1, 128], strides = [1, 1]} : vector<8x128xf32> to vector<1x128xf32>
    %384 = arith.subf %382, %383 : vector<1x128xf32>
    %385 = arith.addf %372, %384 : vector<1x128xf32>
    %386 = vector.extract_strided_slice %218 {offsets = [7, 0], sizes = [1, 128], strides = [1, 1]} : vector<8x128xf32> to vector<1x128xf32>
    %387 = vector.broadcast %386 : vector<1x128xf32> to vector<8x128xf32>
    %388 = arith.mulf %387, %260 : vector<8x128xf32>
    %389 = vector.extract_strided_slice %221 {offsets = [7, 0], sizes = [1, 128], strides = [1, 1]} : vector<8x128xf32> to vector<1x128xf32>
    %390 = vector.broadcast %389 : vector<1x128xf32> to vector<8x128xf32>
    %391 = arith.mulf %390, %257 : vector<8x128xf32>
    %392 = arith.addf %388, %391 : vector<8x128xf32>
    %393 = math.absf %392 : vector<8x128xf32>
    %cst_73 = arith.constant dense<0.000000e+00> : vector<128xf32>
    %394 = vector.multi_reduction <add>, %393, %cst_73 [0] : vector<8x128xf32> to vector<128xf32>
    %395 = vector.shape_cast %394 : vector<128xf32> to vector<1x128xf32>
    %396 = vector.extract_strided_slice %393 {offsets = [7, 0], sizes = [1, 128], strides = [1, 1]} : vector<8x128xf32> to vector<1x128xf32>
    %397 = arith.subf %395, %396 : vector<1x128xf32>
    %398 = arith.addf %385, %397 : vector<1x128xf32>
    %399 = vector.extract_strided_slice %10 {offsets = [1, 0], sizes = [1, 128], strides = [1, 1]} : vector<4x128xf32> to vector<1x128xf32>
    %400 = vector.broadcast %399 : vector<1x128xf32> to vector<8x128xf32>
    %401 = arith.mulf %400, %211 : vector<8x128xf32>
    %402 = arith.addf %207, %401 : vector<8x128xf32>
    %c2 = arith.constant 2 : index
    %c0_74 = arith.constant 0 : index
    %c0_75 = arith.constant 0 : index
    %403 = vector.load %arg3[%c2, %c0_74, %c0_75] : memref<4x8x128xf32, #tpu.memory_space<vmem>>, vector<1x8x128xf32>
    %404 = vector.shape_cast %403 : vector<1x8x128xf32> to vector<8x128xf32>
    %c2_76 = arith.constant 2 : index
    %c0_77 = arith.constant 0 : index
    %c0_78 = arith.constant 0 : index
    %405 = vector.load %arg2[%c2_76, %c0_77, %c0_78] : memref<4x8x128xf32, #tpu.memory_space<vmem>>, vector<1x8x128xf32>
    %406 = vector.shape_cast %405 : vector<1x8x128xf32> to vector<8x128xf32>
    %c2_79 = arith.constant 2 : index
    %c0_80 = arith.constant 0 : index
    %c0_81 = arith.constant 0 : index
    %c0_82 = arith.constant 0 : index
    %407 = vector.load %arg4[%c2_79, %c0_80, %c0_81, %c0_82] : memref<4x2x8x128xf32, #tpu.memory_space<vmem>>, vector<1x2x8x128xf32>
    %408 = vector.shape_cast %407 : vector<1x2x8x128xf32> to vector<2x8x128xf32>
    %409 = tpu.reciprocal %404 : vector<8x128xf32> -> vector<8x128xf32>
    %410 = arith.subf %0, %406 : vector<8x128xf32>
    %411 = vector.extract_strided_slice %408 {offsets = [0, 0, 0], sizes = [1, 8, 128], strides = [1, 1, 1]} : vector<2x8x128xf32> to vector<1x8x128xf32>
    %412 = vector.shape_cast %411 : vector<1x8x128xf32> to vector<8x128xf32>
    %413 = arith.mulf %412, %409 : vector<8x128xf32>
    %414 = vector.extract_strided_slice %408 {offsets = [1, 0, 0], sizes = [1, 8, 128], strides = [1, 1, 1]} : vector<2x8x128xf32> to vector<1x8x128xf32>
    %415 = vector.shape_cast %414 : vector<1x8x128xf32> to vector<8x128xf32>
    %416 = arith.mulf %415, %409 : vector<8x128xf32>
    %417 = vector.extract_strided_slice %408 {offsets = [0, 0, 0], sizes = [1, 8, 128], strides = [1, 1, 1]} : vector<2x8x128xf32> to vector<1x8x128xf32>
    %418 = vector.shape_cast %417 : vector<1x8x128xf32> to vector<8x128xf32>
    %419 = arith.mulf %413, %418 : vector<8x128xf32>
    %cst_83 = arith.constant dense<0.000000e+00> : vector<128xf32>
    %420 = vector.multi_reduction <add>, %419, %cst_83 [0] : vector<8x128xf32> to vector<128xf32>
    %421 = vector.shape_cast %420 : vector<128xf32> to vector<1x128xf32>
    %cst_84 = arith.constant 1.000000e+00 : f32
    %422 = vector.broadcast %cst_84 : f32 to vector<1x128xf32>
    %423 = arith.addf %421, %422 : vector<1x128xf32>
    %424 = vector.extract_strided_slice %408 {offsets = [0, 0, 0], sizes = [1, 8, 128], strides = [1, 1, 1]} : vector<2x8x128xf32> to vector<1x8x128xf32>
    %425 = vector.shape_cast %424 : vector<1x8x128xf32> to vector<8x128xf32>
    %426 = arith.mulf %416, %425 : vector<8x128xf32>
    %cst_85 = arith.constant dense<0.000000e+00> : vector<128xf32>
    %427 = vector.multi_reduction <add>, %426, %cst_85 [0] : vector<8x128xf32> to vector<128xf32>
    %428 = vector.shape_cast %427 : vector<128xf32> to vector<1x128xf32>
    %429 = vector.extract_strided_slice %408 {offsets = [1, 0, 0], sizes = [1, 8, 128], strides = [1, 1, 1]} : vector<2x8x128xf32> to vector<1x8x128xf32>
    %430 = vector.shape_cast %429 : vector<1x8x128xf32> to vector<8x128xf32>
    %431 = arith.mulf %416, %430 : vector<8x128xf32>
    %cst_86 = arith.constant dense<0.000000e+00> : vector<128xf32>
    %432 = vector.multi_reduction <add>, %431, %cst_86 [0] : vector<8x128xf32> to vector<128xf32>
    %433 = vector.shape_cast %432 : vector<128xf32> to vector<1x128xf32>
    %cst_87 = arith.constant 1.000000e+00 : f32
    %434 = vector.broadcast %cst_87 : f32 to vector<1x128xf32>
    %435 = arith.addf %433, %434 : vector<1x128xf32>
    %cst_88 = arith.constant 0.000000e+00 : f32
    %436 = vector.broadcast %cst_88 : f32 to vector<1x128xf32>
    %437 = math.log %423 : vector<1x128xf32>
    %438 = arith.addf %436, %437 : vector<1x128xf32>
    %439 = tpu.reciprocal %423 : vector<1x128xf32> -> vector<1x128xf32>
    %440 = arith.mulf %428, %439 : vector<1x128xf32>
    %441 = vector.broadcast %439 : vector<1x128xf32> to vector<8x128xf32>
    %442 = arith.mulf %413, %441 : vector<8x128xf32>
    %443 = arith.mulf %428, %440 : vector<1x128xf32>
    %444 = arith.subf %435, %443 : vector<1x128xf32>
    %445 = vector.broadcast %428 : vector<1x128xf32> to vector<8x128xf32>
    %446 = arith.mulf %445, %442 : vector<8x128xf32>
    %447 = arith.subf %416, %446 : vector<8x128xf32>
    %448 = math.log %444 : vector<1x128xf32>
    %449 = arith.addf %438, %448 : vector<1x128xf32>
    %450 = tpu.reciprocal %444 : vector<1x128xf32> -> vector<1x128xf32>
    %451 = vector.broadcast %450 : vector<1x128xf32> to vector<8x128xf32>
    %452 = arith.mulf %447, %451 : vector<8x128xf32>
    %453 = vector.broadcast %440 : vector<1x128xf32> to vector<8x128xf32>
    %454 = arith.mulf %453, %452 : vector<8x128xf32>
    %455 = arith.subf %442, %454 : vector<8x128xf32>
    %456 = arith.mulf %410, %410 : vector<8x128xf32>
    %457 = arith.mulf %456, %409 : vector<8x128xf32>
    %cst_89 = arith.constant dense<0.000000e+00> : vector<128xf32>
    %458 = vector.multi_reduction <add>, %457, %cst_89 [0] : vector<8x128xf32> to vector<128xf32>
    %459 = vector.shape_cast %458 : vector<128xf32> to vector<1x128xf32>
    %cst_90 = arith.constant 0.000000e+00 : f32
    %460 = vector.broadcast %cst_90 : f32 to vector<1x128xf32>
    %461 = arith.mulf %413, %410 : vector<8x128xf32>
    %cst_91 = arith.constant dense<0.000000e+00> : vector<128xf32>
    %462 = vector.multi_reduction <add>, %461, %cst_91 [0] : vector<8x128xf32> to vector<128xf32>
    %463 = vector.shape_cast %462 : vector<128xf32> to vector<1x128xf32>
    %464 = arith.mulf %455, %410 : vector<8x128xf32>
    %cst_92 = arith.constant dense<0.000000e+00> : vector<128xf32>
    %465 = vector.multi_reduction <add>, %464, %cst_92 [0] : vector<8x128xf32> to vector<128xf32>
    %466 = vector.shape_cast %465 : vector<128xf32> to vector<1x128xf32>
    %467 = arith.mulf %463, %466 : vector<1x128xf32>
    %468 = arith.addf %460, %467 : vector<1x128xf32>
    %469 = arith.mulf %416, %410 : vector<8x128xf32>
    %cst_93 = arith.constant dense<0.000000e+00> : vector<128xf32>
    %470 = vector.multi_reduction <add>, %469, %cst_93 [0] : vector<8x128xf32> to vector<128xf32>
    %471 = vector.shape_cast %470 : vector<128xf32> to vector<1x128xf32>
    %472 = arith.mulf %452, %410 : vector<8x128xf32>
    %cst_94 = arith.constant dense<0.000000e+00> : vector<128xf32>
    %473 = vector.multi_reduction <add>, %472, %cst_94 [0] : vector<8x128xf32> to vector<128xf32>
    %474 = vector.shape_cast %473 : vector<128xf32> to vector<1x128xf32>
    %475 = arith.mulf %471, %474 : vector<1x128xf32>
    %476 = arith.addf %468, %475 : vector<1x128xf32>
    %477 = arith.subf %459, %476 : vector<1x128xf32>
    %478 = math.log %404 : vector<8x128xf32>
    %cst_95 = arith.constant dense<0.000000e+00> : vector<128xf32>
    %479 = vector.multi_reduction <add>, %478, %cst_95 [0] : vector<8x128xf32> to vector<128xf32>
    %480 = vector.shape_cast %479 : vector<128xf32> to vector<1x128xf32>
    %481 = arith.addf %449, %480 : vector<1x128xf32>
    %cst_96 = arith.constant 14.7030163 : f32
    %482 = vector.broadcast %cst_96 : f32 to vector<1x128xf32>
    %483 = arith.addf %482, %481 : vector<1x128xf32>
    %484 = arith.addf %483, %477 : vector<1x128xf32>
    %cst_97 = arith.constant -5.000000e-01 : f32
    %485 = vector.broadcast %cst_97 : f32 to vector<1x128xf32>
    %486 = arith.mulf %485, %484 : vector<1x128xf32>
    %487 = vector.extract_strided_slice %8 {offsets = [2, 0], sizes = [1, 128], strides = [1, 1]} : vector<4x128xf32> to vector<1x128xf32>
    %488 = arith.addf %487, %486 : vector<1x128xf32>
    %c2_98 = arith.constant 2 : index
    %c0_99 = arith.constant 0 : index
    %489 = vector.load %arg7[%c2_98, %c0_99] : memref<4x128xf32, #tpu.memory_space<vmem>>, vector<1x128xf32>
    tpu.vector_store %arg7[%c2_98, %c0_99], %488 {strides = array<i32>} : memref<4x128xf32, #tpu.memory_space<vmem>>, vector<1x128xf32>,
    %490 = vector.extract_strided_slice %413 {offsets = [0, 0], sizes = [1, 128], strides = [1, 1]} : vector<8x128xf32> to vector<1x128xf32>
    %491 = vector.broadcast %490 : vector<1x128xf32> to vector<8x128xf32>
    %492 = arith.mulf %491, %455 : vector<8x128xf32>
    %493 = vector.extract_strided_slice %416 {offsets = [0, 0], sizes = [1, 128], strides = [1, 1]} : vector<8x128xf32> to vector<1x128xf32>
    %494 = vector.broadcast %493 : vector<1x128xf32> to vector<8x128xf32>
    %495 = arith.mulf %494, %452 : vector<8x128xf32>
    %496 = arith.addf %492, %495 : vector<8x128xf32>
    %497 = math.absf %496 : vector<8x128xf32>
    %cst_100 = arith.constant dense<0.000000e+00> : vector<128xf32>
    %498 = vector.multi_reduction <add>, %497, %cst_100 [0] : vector<8x128xf32> to vector<128xf32>
    %499 = vector.shape_cast %498 : vector<128xf32> to vector<1x128xf32>
    %500 = vector.extract_strided_slice %497 {offsets = [0, 0], sizes = [1, 128], strides = [1, 1]} : vector<8x128xf32> to vector<1x128xf32>
    %501 = arith.subf %499, %500 : vector<1x128xf32>
    %502 = arith.addf %398, %501 : vector<1x128xf32>
    %503 = vector.extract_strided_slice %413 {offsets = [1, 0], sizes = [1, 128], strides = [1, 1]} : vector<8x128xf32> to vector<1x128xf32>
    %504 = vector.broadcast %503 : vector<1x128xf32> to vector<8x128xf32>
    %505 = arith.mulf %504, %455 : vector<8x128xf32>
    %506 = vector.extract_strided_slice %416 {offsets = [1, 0], sizes = [1, 128], strides = [1, 1]} : vector<8x128xf32> to vector<1x128xf32>
    %507 = vector.broadcast %506 : vector<1x128xf32> to vector<8x128xf32>
    %508 = arith.mulf %507, %452 : vector<8x128xf32>
    %509 = arith.addf %505, %508 : vector<8x128xf32>
    %510 = math.absf %509 : vector<8x128xf32>
    %cst_101 = arith.constant dense<0.000000e+00> : vector<128xf32>
    %511 = vector.multi_reduction <add>, %510, %cst_101 [0] : vector<8x128xf32> to vector<128xf32>
    %512 = vector.shape_cast %511 : vector<128xf32> to vector<1x128xf32>
    %513 = vector.extract_strided_slice %510 {offsets = [1, 0], sizes = [1, 128], strides = [1, 1]} : vector<8x128xf32> to vector<1x128xf32>
    %514 = arith.subf %512, %513 : vector<1x128xf32>
    %515 = arith.addf %502, %514 : vector<1x128xf32>
    %516 = vector.extract_strided_slice %413 {offsets = [2, 0], sizes = [1, 128], strides = [1, 1]} : vector<8x128xf32> to vector<1x128xf32>
    %517 = vector.broadcast %516 : vector<1x128xf32> to vector<8x128xf32>
    %518 = arith.mulf %517, %455 : vector<8x128xf32>
    %519 = vector.extract_strided_slice %416 {offsets = [2, 0], sizes = [1, 128], strides = [1, 1]} : vector<8x128xf32> to vector<1x128xf32>
    %520 = vector.broadcast %519 : vector<1x128xf32> to vector<8x128xf32>
    %521 = arith.mulf %520, %452 : vector<8x128xf32>
    %522 = arith.addf %518, %521 : vector<8x128xf32>
    %523 = math.absf %522 : vector<8x128xf32>
    %cst_102 = arith.constant dense<0.000000e+00> : vector<128xf32>
    %524 = vector.multi_reduction <add>, %523, %cst_102 [0] : vector<8x128xf32> to vector<128xf32>
    %525 = vector.shape_cast %524 : vector<128xf32> to vector<1x128xf32>
    %526 = vector.extract_strided_slice %523 {offsets = [2, 0], sizes = [1, 128], strides = [1, 1]} : vector<8x128xf32> to vector<1x128xf32>
    %527 = arith.subf %525, %526 : vector<1x128xf32>
    %528 = arith.addf %515, %527 : vector<1x128xf32>
    %529 = vector.extract_strided_slice %413 {offsets = [3, 0], sizes = [1, 128], strides = [1, 1]} : vector<8x128xf32> to vector<1x128xf32>
    %530 = vector.broadcast %529 : vector<1x128xf32> to vector<8x128xf32>
    %531 = arith.mulf %530, %455 : vector<8x128xf32>
    %532 = vector.extract_strided_slice %416 {offsets = [3, 0], sizes = [1, 128], strides = [1, 1]} : vector<8x128xf32> to vector<1x128xf32>
    %533 = vector.broadcast %532 : vector<1x128xf32> to vector<8x128xf32>
    %534 = arith.mulf %533, %452 : vector<8x128xf32>
    %535 = arith.addf %531, %534 : vector<8x128xf32>
    %536 = math.absf %535 : vector<8x128xf32>
    %cst_103 = arith.constant dense<0.000000e+00> : vector<128xf32>
    %537 = vector.multi_reduction <add>, %536, %cst_103 [0] : vector<8x128xf32> to vector<128xf32>
    %538 = vector.shape_cast %537 : vector<128xf32> to vector<1x128xf32>
    %539 = vector.extract_strided_slice %536 {offsets = [3, 0], sizes = [1, 128], strides = [1, 1]} : vector<8x128xf32> to vector<1x128xf32>
    %540 = arith.subf %538, %539 : vector<1x128xf32>
    %541 = arith.addf %528, %540 : vector<1x128xf32>
    %542 = vector.extract_strided_slice %413 {offsets = [4, 0], sizes = [1, 128], strides = [1, 1]} : vector<8x128xf32> to vector<1x128xf32>
    %543 = vector.broadcast %542 : vector<1x128xf32> to vector<8x128xf32>
    %544 = arith.mulf %543, %455 : vector<8x128xf32>
    %545 = vector.extract_strided_slice %416 {offsets = [4, 0], sizes = [1, 128], strides = [1, 1]} : vector<8x128xf32> to vector<1x128xf32>
    %546 = vector.broadcast %545 : vector<1x128xf32> to vector<8x128xf32>
    %547 = arith.mulf %546, %452 : vector<8x128xf32>
    %548 = arith.addf %544, %547 : vector<8x128xf32>
    %549 = math.absf %548 : vector<8x128xf32>
    %cst_104 = arith.constant dense<0.000000e+00> : vector<128xf32>
    %550 = vector.multi_reduction <add>, %549, %cst_104 [0] : vector<8x128xf32> to vector<128xf32>
    %551 = vector.shape_cast %550 : vector<128xf32> to vector<1x128xf32>
    %552 = vector.extract_strided_slice %549 {offsets = [4, 0], sizes = [1, 128], strides = [1, 1]} : vector<8x128xf32> to vector<1x128xf32>
    %553 = arith.subf %551, %552 : vector<1x128xf32>
    %554 = arith.addf %541, %553 : vector<1x128xf32>
    %555 = vector.extract_strided_slice %413 {offsets = [5, 0], sizes = [1, 128], strides = [1, 1]} : vector<8x128xf32> to vector<1x128xf32>
    %556 = vector.broadcast %555 : vector<1x128xf32> to vector<8x128xf32>
    %557 = arith.mulf %556, %455 : vector<8x128xf32>
    %558 = vector.extract_strided_slice %416 {offsets = [5, 0], sizes = [1, 128], strides = [1, 1]} : vector<8x128xf32> to vector<1x128xf32>
    %559 = vector.broadcast %558 : vector<1x128xf32> to vector<8x128xf32>
    %560 = arith.mulf %559, %452 : vector<8x128xf32>
    %561 = arith.addf %557, %560 : vector<8x128xf32>
    %562 = math.absf %561 : vector<8x128xf32>
    %cst_105 = arith.constant dense<0.000000e+00> : vector<128xf32>
    %563 = vector.multi_reduction <add>, %562, %cst_105 [0] : vector<8x128xf32> to vector<128xf32>
    %564 = vector.shape_cast %563 : vector<128xf32> to vector<1x128xf32>
    %565 = vector.extract_strided_slice %562 {offsets = [5, 0], sizes = [1, 128], strides = [1, 1]} : vector<8x128xf32> to vector<1x128xf32>
    %566 = arith.subf %564, %565 : vector<1x128xf32>
    %567 = arith.addf %554, %566 : vector<1x128xf32>
    %568 = vector.extract_strided_slice %413 {offsets = [6, 0], sizes = [1, 128], strides = [1, 1]} : vector<8x128xf32> to vector<1x128xf32>
    %569 = vector.broadcast %568 : vector<1x128xf32> to vector<8x128xf32>
    %570 = arith.mulf %569, %455 : vector<8x128xf32>
    %571 = vector.extract_strided_slice %416 {offsets = [6, 0], sizes = [1, 128], strides = [1, 1]} : vector<8x128xf32> to vector<1x128xf32>
    %572 = vector.broadcast %571 : vector<1x128xf32> to vector<8x128xf32>
    %573 = arith.mulf %572, %452 : vector<8x128xf32>
    %574 = arith.addf %570, %573 : vector<8x128xf32>
    %575 = math.absf %574 : vector<8x128xf32>
    %cst_106 = arith.constant dense<0.000000e+00> : vector<128xf32>
    %576 = vector.multi_reduction <add>, %575, %cst_106 [0] : vector<8x128xf32> to vector<128xf32>
    %577 = vector.shape_cast %576 : vector<128xf32> to vector<1x128xf32>
    %578 = vector.extract_strided_slice %575 {offsets = [6, 0], sizes = [1, 128], strides = [1, 1]} : vector<8x128xf32> to vector<1x128xf32>
    %579 = arith.subf %577, %578 : vector<1x128xf32>
    %580 = arith.addf %567, %579 : vector<1x128xf32>
    %581 = vector.extract_strided_slice %413 {offsets = [7, 0], sizes = [1, 128], strides = [1, 1]} : vector<8x128xf32> to vector<1x128xf32>
    %582 = vector.broadcast %581 : vector<1x128xf32> to vector<8x128xf32>
    %583 = arith.mulf %582, %455 : vector<8x128xf32>
    %584 = vector.extract_strided_slice %416 {offsets = [7, 0], sizes = [1, 128], strides = [1, 1]} : vector<8x128xf32> to vector<1x128xf32>
    %585 = vector.broadcast %584 : vector<1x128xf32> to vector<8x128xf32>
    %586 = arith.mulf %585, %452 : vector<8x128xf32>
    %587 = arith.addf %583, %586 : vector<8x128xf32>
    %588 = math.absf %587 : vector<8x128xf32>
    %cst_107 = arith.constant dense<0.000000e+00> : vector<128xf32>
    %589 = vector.multi_reduction <add>, %588, %cst_107 [0] : vector<8x128xf32> to vector<128xf32>
    %590 = vector.shape_cast %589 : vector<128xf32> to vector<1x128xf32>
    %591 = vector.extract_strided_slice %588 {offsets = [7, 0], sizes = [1, 128], strides = [1, 1]} : vector<8x128xf32> to vector<1x128xf32>
    %592 = arith.subf %590, %591 : vector<1x128xf32>
    %593 = arith.addf %580, %592 : vector<1x128xf32>
    %594 = vector.extract_strided_slice %10 {offsets = [2, 0], sizes = [1, 128], strides = [1, 1]} : vector<4x128xf32> to vector<1x128xf32>
    %595 = vector.broadcast %594 : vector<1x128xf32> to vector<8x128xf32>
    %596 = arith.mulf %595, %406 : vector<8x128xf32>
    %597 = arith.addf %402, %596 : vector<8x128xf32>
    %c3 = arith.constant 3 : index
    %c0_108 = arith.constant 0 : index
    %c0_109 = arith.constant 0 : index
    %598 = vector.load %arg3[%c3, %c0_108, %c0_109] : memref<4x8x128xf32, #tpu.memory_space<vmem>>, vector<1x8x128xf32>
    %599 = vector.shape_cast %598 : vector<1x8x128xf32> to vector<8x128xf32>
    %c3_110 = arith.constant 3 : index
    %c0_111 = arith.constant 0 : index
    %c0_112 = arith.constant 0 : index
    %600 = vector.load %arg2[%c3_110, %c0_111, %c0_112] : memref<4x8x128xf32, #tpu.memory_space<vmem>>, vector<1x8x128xf32>
    %601 = vector.shape_cast %600 : vector<1x8x128xf32> to vector<8x128xf32>
    %c3_113 = arith.constant 3 : index
    %c0_114 = arith.constant 0 : index
    %c0_115 = arith.constant 0 : index
    %c0_116 = arith.constant 0 : index
    %602 = vector.load %arg4[%c3_113, %c0_114, %c0_115, %c0_116] : memref<4x2x8x128xf32, #tpu.memory_space<vmem>>, vector<1x2x8x128xf32>
    %603 = vector.shape_cast %602 : vector<1x2x8x128xf32> to vector<2x8x128xf32>
    %604 = tpu.reciprocal %599 : vector<8x128xf32> -> vector<8x128xf32>
    %605 = arith.subf %0, %601 : vector<8x128xf32>
    %606 = vector.extract_strided_slice %603 {offsets = [0, 0, 0], sizes = [1, 8, 128], strides = [1, 1, 1]} : vector<2x8x128xf32> to vector<1x8x128xf32>
    %607 = vector.shape_cast %606 : vector<1x8x128xf32> to vector<8x128xf32>
    %608 = arith.mulf %607, %604 : vector<8x128xf32>
    %609 = vector.extract_strided_slice %603 {offsets = [1, 0, 0], sizes = [1, 8, 128], strides = [1, 1, 1]} : vector<2x8x128xf32> to vector<1x8x128xf32>
    %610 = vector.shape_cast %609 : vector<1x8x128xf32> to vector<8x128xf32>
    %611 = arith.mulf %610, %604 : vector<8x128xf32>
    %612 = vector.extract_strided_slice %603 {offsets = [0, 0, 0], sizes = [1, 8, 128], strides = [1, 1, 1]} : vector<2x8x128xf32> to vector<1x8x128xf32>
    %613 = vector.shape_cast %612 : vector<1x8x128xf32> to vector<8x128xf32>
    %614 = arith.mulf %608, %613 : vector<8x128xf32>
    %cst_117 = arith.constant dense<0.000000e+00> : vector<128xf32>
    %615 = vector.multi_reduction <add>, %614, %cst_117 [0] : vector<8x128xf32> to vector<128xf32>
    %616 = vector.shape_cast %615 : vector<128xf32> to vector<1x128xf32>
    %cst_118 = arith.constant 1.000000e+00 : f32
    %617 = vector.broadcast %cst_118 : f32 to vector<1x128xf32>
    %618 = arith.addf %616, %617 : vector<1x128xf32>
    %619 = vector.extract_strided_slice %603 {offsets = [0, 0, 0], sizes = [1, 8, 128], strides = [1, 1, 1]} : vector<2x8x128xf32> to vector<1x8x128xf32>
    %620 = vector.shape_cast %619 : vector<1x8x128xf32> to vector<8x128xf32>
    %621 = arith.mulf %611, %620 : vector<8x128xf32>
    %cst_119 = arith.constant dense<0.000000e+00> : vector<128xf32>
    %622 = vector.multi_reduction <add>, %621, %cst_119 [0] : vector<8x128xf32> to vector<128xf32>
    %623 = vector.shape_cast %622 : vector<128xf32> to vector<1x128xf32>
    %624 = vector.extract_strided_slice %603 {offsets = [1, 0, 0], sizes = [1, 8, 128], strides = [1, 1, 1]} : vector<2x8x128xf32> to vector<1x8x128xf32>
    %625 = vector.shape_cast %624 : vector<1x8x128xf32> to vector<8x128xf32>
    %626 = arith.mulf %611, %625 : vector<8x128xf32>
    %cst_120 = arith.constant dense<0.000000e+00> : vector<128xf32>
    %627 = vector.multi_reduction <add>, %626, %cst_120 [0] : vector<8x128xf32> to vector<128xf32>
    %628 = vector.shape_cast %627 : vector<128xf32> to vector<1x128xf32>
    %cst_121 = arith.constant 1.000000e+00 : f32
    %629 = vector.broadcast %cst_121 : f32 to vector<1x128xf32>
    %630 = arith.addf %628, %629 : vector<1x128xf32>
    %cst_122 = arith.constant 0.000000e+00 : f32
    %631 = vector.broadcast %cst_122 : f32 to vector<1x128xf32>
    %632 = math.log %618 : vector<1x128xf32>
    %633 = arith.addf %631, %632 : vector<1x128xf32>
    %634 = tpu.reciprocal %618 : vector<1x128xf32> -> vector<1x128xf32>
    %635 = arith.mulf %623, %634 : vector<1x128xf32>
    %636 = vector.broadcast %634 : vector<1x128xf32> to vector<8x128xf32>
    %637 = arith.mulf %608, %636 : vector<8x128xf32>
    %638 = arith.mulf %623, %635 : vector<1x128xf32>
    %639 = arith.subf %630, %638 : vector<1x128xf32>
    %640 = vector.broadcast %623 : vector<1x128xf32> to vector<8x128xf32>
    %641 = arith.mulf %640, %637 : vector<8x128xf32>
    %642 = arith.subf %611, %641 : vector<8x128xf32>
    %643 = math.log %639 : vector<1x128xf32>
    %644 = arith.addf %633, %643 : vector<1x128xf32>
    %645 = tpu.reciprocal %639 : vector<1x128xf32> -> vector<1x128xf32>
    %646 = vector.broadcast %645 : vector<1x128xf32> to vector<8x128xf32>
    %647 = arith.mulf %642, %646 : vector<8x128xf32>
    %648 = vector.broadcast %635 : vector<1x128xf32> to vector<8x128xf32>
    %649 = arith.mulf %648, %647 : vector<8x128xf32>
    %650 = arith.subf %637, %649 : vector<8x128xf32>
    %651 = arith.mulf %605, %605 : vector<8x128xf32>
    %652 = arith.mulf %651, %604 : vector<8x128xf32>
    %cst_123 = arith.constant dense<0.000000e+00> : vector<128xf32>
    %653 = vector.multi_reduction <add>, %652, %cst_123 [0] : vector<8x128xf32> to vector<128xf32>
    %654 = vector.shape_cast %653 : vector<128xf32> to vector<1x128xf32>
    %cst_124 = arith.constant 0.000000e+00 : f32
    %655 = vector.broadcast %cst_124 : f32 to vector<1x128xf32>
    %656 = arith.mulf %608, %605 : vector<8x128xf32>
    %cst_125 = arith.constant dense<0.000000e+00> : vector<128xf32>
    %657 = vector.multi_reduction <add>, %656, %cst_125 [0] : vector<8x128xf32> to vector<128xf32>
    %658 = vector.shape_cast %657 : vector<128xf32> to vector<1x128xf32>
    %659 = arith.mulf %650, %605 : vector<8x128xf32>
    %cst_126 = arith.constant dense<0.000000e+00> : vector<128xf32>
    %660 = vector.multi_reduction <add>, %659, %cst_126 [0] : vector<8x128xf32> to vector<128xf32>
    %661 = vector.shape_cast %660 : vector<128xf32> to vector<1x128xf32>
    %662 = arith.mulf %658, %661 : vector<1x128xf32>
    %663 = arith.addf %655, %662 : vector<1x128xf32>
    %664 = arith.mulf %611, %605 : vector<8x128xf32>
    %cst_127 = arith.constant dense<0.000000e+00> : vector<128xf32>
    %665 = vector.multi_reduction <add>, %664, %cst_127 [0] : vector<8x128xf32> to vector<128xf32>
    %666 = vector.shape_cast %665 : vector<128xf32> to vector<1x128xf32>
    %667 = arith.mulf %647, %605 : vector<8x128xf32>
    %cst_128 = arith.constant dense<0.000000e+00> : vector<128xf32>
    %668 = vector.multi_reduction <add>, %667, %cst_128 [0] : vector<8x128xf32> to vector<128xf32>
    %669 = vector.shape_cast %668 : vector<128xf32> to vector<1x128xf32>
    %670 = arith.mulf %666, %669 : vector<1x128xf32>
    %671 = arith.addf %663, %670 : vector<1x128xf32>
    %672 = arith.subf %654, %671 : vector<1x128xf32>
    %673 = math.log %599 : vector<8x128xf32>
    %cst_129 = arith.constant dense<0.000000e+00> : vector<128xf32>
    %674 = vector.multi_reduction <add>, %673, %cst_129 [0] : vector<8x128xf32> to vector<128xf32>
    %675 = vector.shape_cast %674 : vector<128xf32> to vector<1x128xf32>
    %676 = arith.addf %644, %675 : vector<1x128xf32>
    %cst_130 = arith.constant 14.7030163 : f32
    %677 = vector.broadcast %cst_130 : f32 to vector<1x128xf32>
    %678 = arith.addf %677, %676 : vector<1x128xf32>
    %679 = arith.addf %678, %672 : vector<1x128xf32>
    %cst_131 = arith.constant -5.000000e-01 : f32
    %680 = vector.broadcast %cst_131 : f32 to vector<1x128xf32>
    %681 = arith.mulf %680, %679 : vector<1x128xf32>
    %682 = vector.extract_strided_slice %8 {offsets = [3, 0], sizes = [1, 128], strides = [1, 1]} : vector<4x128xf32> to vector<1x128xf32>
    %683 = arith.addf %682, %681 : vector<1x128xf32>
    %c3_132 = arith.constant 3 : index
    %c0_133 = arith.constant 0 : index
    %684 = vector.load %arg7[%c3_132, %c0_133] : memref<4x128xf32, #tpu.memory_space<vmem>>, vector<1x128xf32>
    tpu.vector_store %arg7[%c3_132, %c0_133], %683 {strides = array<i32>} : memref<4x128xf32, #tpu.memory_space<vmem>>, vector<1x128xf32>,
    %685 = vector.extract_strided_slice %608 {offsets = [0, 0], sizes = [1, 128], strides = [1, 1]} : vector<8x128xf32> to vector<1x128xf32>
    %686 = vector.broadcast %685 : vector<1x128xf32> to vector<8x128xf32>
    %687 = arith.mulf %686, %650 : vector<8x128xf32>
    %688 = vector.extract_strided_slice %611 {offsets = [0, 0], sizes = [1, 128], strides = [1, 1]} : vector<8x128xf32> to vector<1x128xf32>
    %689 = vector.broadcast %688 : vector<1x128xf32> to vector<8x128xf32>
    %690 = arith.mulf %689, %647 : vector<8x128xf32>
    %691 = arith.addf %687, %690 : vector<8x128xf32>
    %692 = math.absf %691 : vector<8x128xf32>
    %cst_134 = arith.constant dense<0.000000e+00> : vector<128xf32>
    %693 = vector.multi_reduction <add>, %692, %cst_134 [0] : vector<8x128xf32> to vector<128xf32>
    %694 = vector.shape_cast %693 : vector<128xf32> to vector<1x128xf32>
    %695 = vector.extract_strided_slice %692 {offsets = [0, 0], sizes = [1, 128], strides = [1, 1]} : vector<8x128xf32> to vector<1x128xf32>
    %696 = arith.subf %694, %695 : vector<1x128xf32>
    %697 = arith.addf %593, %696 : vector<1x128xf32>
    %698 = vector.extract_strided_slice %608 {offsets = [1, 0], sizes = [1, 128], strides = [1, 1]} : vector<8x128xf32> to vector<1x128xf32>
    %699 = vector.broadcast %698 : vector<1x128xf32> to vector<8x128xf32>
    %700 = arith.mulf %699, %650 : vector<8x128xf32>
    %701 = vector.extract_strided_slice %611 {offsets = [1, 0], sizes = [1, 128], strides = [1, 1]} : vector<8x128xf32> to vector<1x128xf32>
    %702 = vector.broadcast %701 : vector<1x128xf32> to vector<8x128xf32>
    %703 = arith.mulf %702, %647 : vector<8x128xf32>
    %704 = arith.addf %700, %703 : vector<8x128xf32>
    %705 = math.absf %704 : vector<8x128xf32>
    %cst_135 = arith.constant dense<0.000000e+00> : vector<128xf32>
    %706 = vector.multi_reduction <add>, %705, %cst_135 [0] : vector<8x128xf32> to vector<128xf32>
    %707 = vector.shape_cast %706 : vector<128xf32> to vector<1x128xf32>
    %708 = vector.extract_strided_slice %705 {offsets = [1, 0], sizes = [1, 128], strides = [1, 1]} : vector<8x128xf32> to vector<1x128xf32>
    %709 = arith.subf %707, %708 : vector<1x128xf32>
    %710 = arith.addf %697, %709 : vector<1x128xf32>
    %711 = vector.extract_strided_slice %608 {offsets = [2, 0], sizes = [1, 128], strides = [1, 1]} : vector<8x128xf32> to vector<1x128xf32>
    %712 = vector.broadcast %711 : vector<1x128xf32> to vector<8x128xf32>
    %713 = arith.mulf %712, %650 : vector<8x128xf32>
    %714 = vector.extract_strided_slice %611 {offsets = [2, 0], sizes = [1, 128], strides = [1, 1]} : vector<8x128xf32> to vector<1x128xf32>
    %715 = vector.broadcast %714 : vector<1x128xf32> to vector<8x128xf32>
    %716 = arith.mulf %715, %647 : vector<8x128xf32>
    %717 = arith.addf %713, %716 : vector<8x128xf32>
    %718 = math.absf %717 : vector<8x128xf32>
    %cst_136 = arith.constant dense<0.000000e+00> : vector<128xf32>
    %719 = vector.multi_reduction <add>, %718, %cst_136 [0] : vector<8x128xf32> to vector<128xf32>
    %720 = vector.shape_cast %719 : vector<128xf32> to vector<1x128xf32>
    %721 = vector.extract_strided_slice %718 {offsets = [2, 0], sizes = [1, 128], strides = [1, 1]} : vector<8x128xf32> to vector<1x128xf32>
    %722 = arith.subf %720, %721 : vector<1x128xf32>
    %723 = arith.addf %710, %722 : vector<1x128xf32>
    %724 = vector.extract_strided_slice %608 {offsets = [3, 0], sizes = [1, 128], strides = [1, 1]} : vector<8x128xf32> to vector<1x128xf32>
    %725 = vector.broadcast %724 : vector<1x128xf32> to vector<8x128xf32>
    %726 = arith.mulf %725, %650 : vector<8x128xf32>
    %727 = vector.extract_strided_slice %611 {offsets = [3, 0], sizes = [1, 128], strides = [1, 1]} : vector<8x128xf32> to vector<1x128xf32>
    %728 = vector.broadcast %727 : vector<1x128xf32> to vector<8x128xf32>
    %729 = arith.mulf %728, %647 : vector<8x128xf32>
    %730 = arith.addf %726, %729 : vector<8x128xf32>
    %731 = math.absf %730 : vector<8x128xf32>
    %cst_137 = arith.constant dense<0.000000e+00> : vector<128xf32>
    %732 = vector.multi_reduction <add>, %731, %cst_137 [0] : vector<8x128xf32> to vector<128xf32>
    %733 = vector.shape_cast %732 : vector<128xf32> to vector<1x128xf32>
    %734 = vector.extract_strided_slice %731 {offsets = [3, 0], sizes = [1, 128], strides = [1, 1]} : vector<8x128xf32> to vector<1x128xf32>
    %735 = arith.subf %733, %734 : vector<1x128xf32>
    %736 = arith.addf %723, %735 : vector<1x128xf32>
    %737 = vector.extract_strided_slice %608 {offsets = [4, 0], sizes = [1, 128], strides = [1, 1]} : vector<8x128xf32> to vector<1x128xf32>
    %738 = vector.broadcast %737 : vector<1x128xf32> to vector<8x128xf32>
    %739 = arith.mulf %738, %650 : vector<8x128xf32>
    %740 = vector.extract_strided_slice %611 {offsets = [4, 0], sizes = [1, 128], strides = [1, 1]} : vector<8x128xf32> to vector<1x128xf32>
    %741 = vector.broadcast %740 : vector<1x128xf32> to vector<8x128xf32>
    %742 = arith.mulf %741, %647 : vector<8x128xf32>
    %743 = arith.addf %739, %742 : vector<8x128xf32>
    %744 = math.absf %743 : vector<8x128xf32>
    %cst_138 = arith.constant dense<0.000000e+00> : vector<128xf32>
    %745 = vector.multi_reduction <add>, %744, %cst_138 [0] : vector<8x128xf32> to vector<128xf32>
    %746 = vector.shape_cast %745 : vector<128xf32> to vector<1x128xf32>
    %747 = vector.extract_strided_slice %744 {offsets = [4, 0], sizes = [1, 128], strides = [1, 1]} : vector<8x128xf32> to vector<1x128xf32>
    %748 = arith.subf %746, %747 : vector<1x128xf32>
    %749 = arith.addf %736, %748 : vector<1x128xf32>
    %750 = vector.extract_strided_slice %608 {offsets = [5, 0], sizes = [1, 128], strides = [1, 1]} : vector<8x128xf32> to vector<1x128xf32>
    %751 = vector.broadcast %750 : vector<1x128xf32> to vector<8x128xf32>
    %752 = arith.mulf %751, %650 : vector<8x128xf32>
    %753 = vector.extract_strided_slice %611 {offsets = [5, 0], sizes = [1, 128], strides = [1, 1]} : vector<8x128xf32> to vector<1x128xf32>
    %754 = vector.broadcast %753 : vector<1x128xf32> to vector<8x128xf32>
    %755 = arith.mulf %754, %647 : vector<8x128xf32>
    %756 = arith.addf %752, %755 : vector<8x128xf32>
    %757 = math.absf %756 : vector<8x128xf32>
    %cst_139 = arith.constant dense<0.000000e+00> : vector<128xf32>
    %758 = vector.multi_reduction <add>, %757, %cst_139 [0] : vector<8x128xf32> to vector<128xf32>
    %759 = vector.shape_cast %758 : vector<128xf32> to vector<1x128xf32>
    %760 = vector.extract_strided_slice %757 {offsets = [5, 0], sizes = [1, 128], strides = [1, 1]} : vector<8x128xf32> to vector<1x128xf32>
    %761 = arith.subf %759, %760 : vector<1x128xf32>
    %762 = arith.addf %749, %761 : vector<1x128xf32>
    %763 = vector.extract_strided_slice %608 {offsets = [6, 0], sizes = [1, 128], strides = [1, 1]} : vector<8x128xf32> to vector<1x128xf32>
    %764 = vector.broadcast %763 : vector<1x128xf32> to vector<8x128xf32>
    %765 = arith.mulf %764, %650 : vector<8x128xf32>
    %766 = vector.extract_strided_slice %611 {offsets = [6, 0], sizes = [1, 128], strides = [1, 1]} : vector<8x128xf32> to vector<1x128xf32>
    %767 = vector.broadcast %766 : vector<1x128xf32> to vector<8x128xf32>
    %768 = arith.mulf %767, %647 : vector<8x128xf32>
    %769 = arith.addf %765, %768 : vector<8x128xf32>
    %770 = math.absf %769 : vector<8x128xf32>
    %cst_140 = arith.constant dense<0.000000e+00> : vector<128xf32>
    %771 = vector.multi_reduction <add>, %770, %cst_140 [0] : vector<8x128xf32> to vector<128xf32>
    %772 = vector.shape_cast %771 : vector<128xf32> to vector<1x128xf32>
    %773 = vector.extract_strided_slice %770 {offsets = [6, 0], sizes = [1, 128], strides = [1, 1]} : vector<8x128xf32> to vector<1x128xf32>
    %774 = arith.subf %772, %773 : vector<1x128xf32>
    %775 = arith.addf %762, %774 : vector<1x128xf32>
    %776 = vector.extract_strided_slice %608 {offsets = [7, 0], sizes = [1, 128], strides = [1, 1]} : vector<8x128xf32> to vector<1x128xf32>
    %777 = vector.broadcast %776 : vector<1x128xf32> to vector<8x128xf32>
    %778 = arith.mulf %777, %650 : vector<8x128xf32>
    %779 = vector.extract_strided_slice %611 {offsets = [7, 0], sizes = [1, 128], strides = [1, 1]} : vector<8x128xf32> to vector<1x128xf32>
    %780 = vector.broadcast %779 : vector<1x128xf32> to vector<8x128xf32>
    %781 = arith.mulf %780, %647 : vector<8x128xf32>
    %782 = arith.addf %778, %781 : vector<8x128xf32>
    %783 = math.absf %782 : vector<8x128xf32>
    %cst_141 = arith.constant dense<0.000000e+00> : vector<128xf32>
    %784 = vector.multi_reduction <add>, %783, %cst_141 [0] : vector<8x128xf32> to vector<128xf32>
    %785 = vector.shape_cast %784 : vector<128xf32> to vector<1x128xf32>
    %786 = vector.extract_strided_slice %783 {offsets = [7, 0], sizes = [1, 128], strides = [1, 1]} : vector<8x128xf32> to vector<1x128xf32>
    %787 = arith.subf %785, %786 : vector<1x128xf32>
    %788 = arith.addf %775, %787 : vector<1x128xf32>
    %789 = vector.extract_strided_slice %10 {offsets = [3, 0], sizes = [1, 128], strides = [1, 1]} : vector<4x128xf32> to vector<1x128xf32>
    %790 = vector.broadcast %789 : vector<1x128xf32> to vector<8x128xf32>
    %791 = arith.mulf %790, %601 : vector<8x128xf32>
    %792 = arith.addf %597, %791 : vector<8x128xf32>
    %c0_142 = arith.constant 0 : index
    %c0_143 = arith.constant 0 : index
    %793 = vector.load %arg7[%c0_142, %c0_143] : memref<4x128xf32, #tpu.memory_space<vmem>>, vector<4x128xf32>
    %cst_144 = arith.constant dense<0xFF800000> : vector<128xf32>
    %794 = vector.multi_reduction <maximumf>, %793, %cst_144 [0] : vector<4x128xf32> to vector<128xf32>
    %795 = vector.shape_cast %794 : vector<128xf32> to vector<1x128xf32>
    %796 = vector.broadcast %795 : vector<1x128xf32> to vector<4x128xf32>
    %797 = arith.subf %793, %796 : vector<4x128xf32>
    %798 = math.exp %797 : vector<4x128xf32>
    %cst_145 = arith.constant dense<0.000000e+00> : vector<128xf32>
    %799 = vector.multi_reduction <add>, %798, %cst_145 [0] : vector<4x128xf32> to vector<128xf32>
    %800 = vector.shape_cast %799 : vector<128xf32> to vector<1x128xf32>
    %801 = math.log %800 : vector<1x128xf32>
    %802 = arith.addf %795, %801 : vector<1x128xf32>
    %803 = arith.subf %792, %0 : vector<8x128xf32>
    %804 = arith.mulf %803, %803 : vector<8x128xf32>
    %cst_146 = arith.constant dense<0.000000e+00> : vector<128xf32>
    %805 = vector.multi_reduction <add>, %804, %cst_146 [0] : vector<8x128xf32> to vector<128xf32>
    %806 = vector.shape_cast %805 : vector<128xf32> to vector<1x128xf32>
    %cst_147 = arith.constant 1.250000e-01 : f32
    %807 = vector.broadcast %cst_147 : f32 to vector<1x128xf32>
    %808 = arith.mulf %806, %807 : vector<1x128xf32>
    %c0_148 = arith.constant 0 : index
    %c0_149 = arith.constant 0 : index
    %809 = vector.load %arg6[%c0_148, %c0_149] : memref<3x128xf32, #tpu.memory_space<vmem>>, vector<1x128xf32>
    tpu.vector_store %arg6[%c0_148, %c0_149], %802 {strides = array<i32>} : memref<3x128xf32, #tpu.memory_space<vmem>>, vector<1x128xf32>,
    %c1_150 = arith.constant 1 : index
    %c0_151 = arith.constant 0 : index
    %810 = vector.load %arg6[%c1_150, %c0_151] : memref<3x128xf32, #tpu.memory_space<vmem>>, vector<1x128xf32>
    tpu.vector_store %arg6[%c1_150, %c0_151], %788 {strides = array<i32>} : memref<3x128xf32, #tpu.memory_space<vmem>>, vector<1x128xf32>,
    %c2_152 = arith.constant 2 : index
    %c0_153 = arith.constant 0 : index
    %811 = vector.load %arg6[%c2_152, %c0_153] : memref<3x128xf32, #tpu.memory_space<vmem>>, vector<1x128xf32>
    tpu.vector_store %arg6[%c2_152, %c0_153], %808 {strides = array<i32>} : memref<3x128xf32, #tpu.memory_space<vmem>>, vector<1x128xf32>,
    return
  }
  func.func @transform_0(%arg0: i32) -> (i32, i32) {
    %c0_i32 = arith.constant 0 : i32
    %c0_i32_0 = arith.constant 0 : i32
    return %c0_i32, %arg0 : i32, i32
  }
  func.func @transform_1(%arg0: i32) -> (i32, i32, i32) {
    %c0_i32 = arith.constant 0 : i32
    %c0_i32_0 = arith.constant 0 : i32
    %c0_i32_1 = arith.constant 0 : i32
    return %c0_i32, %c0_i32_0, %arg0 : i32, i32, i32
  }
  func.func @transform_2(%arg0: i32) -> (i32, i32, i32) {
    %c0_i32 = arith.constant 0 : i32
    %c0_i32_0 = arith.constant 0 : i32
    %c0_i32_1 = arith.constant 0 : i32
    return %c0_i32, %c0_i32_0, %arg0 : i32, i32, i32
  }
  func.func @transform_3(%arg0: i32) -> (i32, i32, i32, i32) {
    %c0_i32 = arith.constant 0 : i32
    %c0_i32_0 = arith.constant 0 : i32
    %c0_i32_1 = arith.constant 0 : i32
    %c0_i32_2 = arith.constant 0 : i32
    return %c0_i32, %c0_i32_0, %c0_i32_1, %arg0 : i32, i32, i32, i32
  }
  func.func @transform_4(%arg0: i32) -> (i32, i32) {
    %c0_i32 = arith.constant 0 : i32
    %c0_i32_0 = arith.constant 0 : i32
    return %c0_i32, %arg0 : i32, i32
  }
  func.func @transform_5(%arg0: i32) -> (i32, i32) {
    %c0_i32 = arith.constant 0 : i32
    %c0_i32_0 = arith.constant 0 : i32
    return %c0_i32, %arg0 : i32, i32
  }
}

</mosaic_0001>

<llo_original>
// kernel: tpu_custom_call.1
$region0: #{tpu_custom_call.1}
  #allocation0 [shape = 'u32[]', space=smem, size = 0x4, offset = 0x4, fixed_abs, tag = 'smem constant byte address 0x4 - core index']
  #allocation1 [shape = 'u32[144,128]{1,0:T(1,128)}', space=vmem, size = 0x12000, scoped, tag = 'internal scratch']
  #allocation2 [shape = 'f32[4,128]{1,0:T(4,128)}', space=vmem, size = 0x800, scoped, tag = 'scratch operand']
  %s0 = inlined_call_operand.hbm [shape: f32[4,128], index: 0, kind: input, shape index: {}]
  %s1 = inlined_call_operand.hbm [shape: f32[4,8,128], index: 1, kind: input, shape index: {}]
  %s2 = inlined_call_operand.hbm [shape: f32[4,8,128], index: 2, kind: input, shape index: {}]
  %s3 = inlined_call_operand.hbm [shape: f32[4,2,8,128], index: 3, kind: input, shape index: {}]
  %s4 = inlined_call_operand.hbm [shape: f32[8,128], index: 4, kind: input, shape index: {}]
  %s5 = inlined_call_operand.hbm [shape: f32[3,128], index: 5, kind: output, shape index: {}]
  %s6 = sld [smem:[#allocation0]]
  $region50: #{tpu_custom_call.1} parent=0
    _
  %s8 = ssub.s32 1, %s6
  %s9 = scalar_select 0, %s8, %s6
  $region1: #{tpu_custom_call.1} parent=0
    #allocation3 [shape = 'u8[2048]{0}', space=vmem, size = 0x800, scoped, tag = 'input window, operand 0, single buffered']
    #allocation4 [shape = 's32[1]{0}', space=sflag, size = 0x4, scoped, tag = 'scoped memory for tpu_custom_call.1']
    #allocation5 [shape = 's32[1]{0}', space=sflag, size = 0x4, scoped, tag = 'scoped memory for tpu_custom_call.1']
    #allocation6 [shape = 'u8[16384]{0}', space=vmem, size = 0x4000, scoped, tag = 'input window, operand 1, single buffered']
    #allocation7 [shape = 's32[1]{0}', space=sflag, size = 0x4, scoped, tag = 'scoped memory for tpu_custom_call.1']
    #allocation8 [shape = 'u8[16384]{0}', space=vmem, size = 0x4000, scoped, tag = 'input window, operand 2, single buffered']
    #allocation9 [shape = 'u8[32768]{0}', space=vmem, size = 0x8000, scoped, tag = 'input window, operand 3, single buffered']
    #allocation10 [shape = 's32[1]{0}', space=sflag, size = 0x4, scoped, tag = 'scoped memory for tpu_custom_call.1']
    #allocation11 [shape = 'u8[4096]{0}', space=vmem, size = 0x1000, scoped, tag = 'input window, operand 4, single buffered']
    #allocation12 [shape = 'u8[2048]{0}', space=vmem, size = 0x800, scoped, tag = 'output window, operand 0, single buffered']
    %10 = vsyncpa [#allocation4], 0
    %11 = vsyncpa [#allocation7], 0
    %12 = vsyncpa [#allocation10], 0
    %13 = vsyncpa [#allocation5], 0
    // Predicated region
    $region2: #{tpu_custom_call.1} parent=1 // pred_check
      _
    $region3: #{tpu_custom_call.1} parent=1 // pred_check_branch
      %15 = sbr.rel (0) target = $region5
    $region4: #{tpu_custom_call.1} parent=1 // pred_region
      %s17 = ssub.s32 64, 64
      %18 = vsyncadd [#allocation4], %s17
      %s20 = sshll.u32 [#allocation3], 4
      %s21 = int_to_ptr.vmem [resolvable:$true] %s20
      %23 = dma.hbm_to_vmem [thread:$0]  %s0, 64, %s21, [#allocation4]
    $region5: #{tpu_custom_call.1} parent=1 // pred_fallthru
      _
    // Predicated region
    $region6: #{tpu_custom_call.1} parent=1 // pred_check
      _
    $region7: #{tpu_custom_call.1} parent=1 // pred_check_branch
      %25 = sbr.rel (0) target = $region9
    $region8: #{tpu_custom_call.1} parent=1 // pred_region
      %s27 = ssub.s32 512, 512
      %28 = vsyncadd [#allocation7], %s27
      %s29 = sshll.u32 [#allocation6], 4
      %s30 = int_to_ptr.vmem [resolvable:$true] %s29
      %35 = dma.hbm_to_vmem [thread:$0]  %s1, 512, %s30, [#allocation7], 128, 128, 8
    $region9: #{tpu_custom_call.1} parent=1 // pred_fallthru
      _
    // Predicated region
    $region10: #{tpu_custom_call.1} parent=1 // pred_check
      _
    $region11: #{tpu_custom_call.1} parent=1 // pred_check_branch
      %37 = sbr.rel (0) target = $region13
    $region12: #{tpu_custom_call.1} parent=1 // pred_region
      %s39 = ssub.s32 512, 512
      %40 = vsyncadd [#allocation7], %s39
      %s41 = sshll.u32 [#allocation8], 4
      %s42 = int_to_ptr.vmem [resolvable:$true] %s41
      %47 = dma.hbm_to_vmem [thread:$0]  %s2, 512, %s42, [#allocation7], 128, 128, 8
    $region13: #{tpu_custom_call.1} parent=1 // pred_fallthru
      _
    // Predicated region
    $region14: #{tpu_custom_call.1} parent=1 // pred_check
      _
    $region15: #{tpu_custom_call.1} parent=1 // pred_check_branch
      %49 = sbr.rel (0) target = $region17
    $region16: #{tpu_custom_call.1} parent=1 // pred_region
      %s51 = ssub.s32 1024, 1024
      %52 = vsyncadd [#allocation10], %s51
      %s53 = sshll.u32 [#allocation9], 4
      %s54 = int_to_ptr.vmem [resolvable:$true] %s53
      %59 = dma.hbm_to_vmem [thread:$0]  %s3, 1024, %s54, [#allocation10], 128, 128, 8
    $region17: #{tpu_custom_call.1} parent=1 // pred_fallthru
      _
    // Predicated region
    $region18: #{tpu_custom_call.1} parent=1 // pred_check
      _
    $region19: #{tpu_custom_call.1} parent=1 // pred_check_branch
      %61 = sbr.rel (0) target = $region21
    $region20: #{tpu_custom_call.1} parent=1 // pred_region
      %s63 = ssub.s32 128, 128
      %64 = vsyncadd [#allocation10], %s63
      %s66 = sshll.u32 [#allocation11], 4
      %s67 = int_to_ptr.vmem [resolvable:$true] %s66
      %69 = dma.hbm_to_vmem [thread:$0]  %s4, 128, %s67, [#allocation10]
    $region21: #{tpu_custom_call.1} parent=1 // pred_fallthru
      _
    // Predicated region
    $region22: #{tpu_custom_call.1} parent=1 // pred_check
      _
    $region23: #{tpu_custom_call.1} parent=1 // pred_check_branch
      %71 = sbr.rel (0) target = $region25
    $region24: #{tpu_custom_call.1} parent=1 // pred_region
      %72 = dma.done [#allocation4], 64
    $region25: #{tpu_custom_call.1} parent=1 // pred_fallthru
      _
    // Predicated region
    $region26: #{tpu_custom_call.1} parent=1 // pred_check
      _
    $region27: #{tpu_custom_call.1} parent=1 // pred_check_branch
      %74 = sbr.rel (0) target = $region29
    $region28: #{tpu_custom_call.1} parent=1 // pred_region
      %75 = dma.done [#allocation7], 512
    $region29: #{tpu_custom_call.1} parent=1 // pred_fallthru
      _
    // Predicated region
    $region30: #{tpu_custom_call.1} parent=1 // pred_check
      _
    $region31: #{tpu_custom_call.1} parent=1 // pred_check_branch
      %77 = sbr.rel (0) target = $region33
    $region32: #{tpu_custom_call.1} parent=1 // pred_region
      %78 = dma.done [#allocation7], 512
    $region33: #{tpu_custom_call.1} parent=1 // pred_fallthru
      _
    // Predicated region
    $region34: #{tpu_custom_call.1} parent=1 // pred_check
      _
    $region35: #{tpu_custom_call.1} parent=1 // pred_check_branch
      %80 = sbr.rel (0) target = $region37
    $region36: #{tpu_custom_call.1} parent=1 // pred_region
      %81 = dma.done [#allocation10], 1024
    $region37: #{tpu_custom_call.1} parent=1 // pred_fallthru
      _
    // Predicated region
    $region38: #{tpu_custom_call.1} parent=1 // pred_check
      _
    $region39: #{tpu_custom_call.1} parent=1 // pred_check_branch
      %83 = sbr.rel (0) target = $region41
    $region40: #{tpu_custom_call.1} parent=1 // pred_region
      %84 = dma.done [#allocation10], 128
    $region41: #{tpu_custom_call.1} parent=1 // pred_fallthru
      _
    %v85 = vld [vmem:[#allocation11] sm:$0xff]
    %v86 = vld [vmem:[#allocation3] sm:$0xf]
    %vm87 = vcmask 1043456
    %v88 = vsel %vm87, %v86, 0.0
    %v89 = vrot.slane %v88, 4
    %v90 = vadd.f32 %v88, %v89
    %v91 = vrot.slane %v90, 2
    %v92 = vadd.f32 %v90, %v91
    %v93 = vrot.slane %v92, 1
    %v94 = vadd.f32 %v92, %v93
    %v95 = vrcp.pop %v94
    %v96 = vlog2.pop %v86
    %v97 = vmul.f32 %v96, 0.6931472
    %v98 = vlog2.pop %v94
    %v99 = vmul.f32 %v98, 0.6931472
    %v100 = vsub.f32 %v97, %v99
    %v101 = vmul.f32 %v86, %v95
    %v102 = vld [vmem:[#allocation8] sm:$0xff]
    %v103 = vld [vmem:[#allocation6] sm:$0xff]
    %v104 = vld [vmem:[#allocation9] sm:$0xff]
    %v105 = vld [vmem:[#allocation9 + $0x8] sm:$0xff]
    %v106 = vrcp.pop %v102
    %v107 = vsub.f32 %v85, %v103
    %v108 = vmul.f32 %v104, %v106
    %v109 = vmul.f32 %v105, %v106
    %v110 = vmul.f32 %v108, %v104
    %v111 = vrot.slane %v110, 4
    %v112 = vadd.f32 %v110, %v111
    %v113 = vrot.slane %v112, 2
    %v114 = vadd.f32 %v112, %v113
    %v115 = vrot.slane %v114, 1
    %v116 = vadd.f32 %v114, %v115
    %v117 = vadd.f32 %v116, 1.0
    %v118 = vmul.f32 %v109, %v104
    %v119 = vrot.slane %v118, 4
    %v120 = vadd.f32 %v118, %v119
    %v121 = vrot.slane %v120, 2
    %v122 = vadd.f32 %v120, %v121
    %v123 = vrot.slane %v122, 1
    %v124 = vadd.f32 %v122, %v123
    %v125 = vmul.f32 %v109, %v105
    %v126 = vrot.slane %v125, 4
    %v127 = vadd.f32 %v125, %v126
    %v128 = vrot.slane %v127, 2
    %v129 = vadd.f32 %v127, %v128
    %v130 = vrot.slane %v129, 1
    %v131 = vadd.f32 %v129, %v130
    %v132 = vadd.f32 %v131, 1.0
    %v133 = vlog2.pop %v117
    %v134 = vmul.f32 %v133, 0.6931472
    %v135 = vadd.f32 %v134, 0.0
    %v136 = vrcp.pop %v117
    %v137 = vmul.f32 %v124, %v136
    %v138 = vmul.f32 %v108, %v136
    %v139 = vmul.f32 %v124, %v137
    %v140 = vsub.f32 %v132, %v139
    %v141 = vmul.f32 %v124, %v138
    %v142 = vsub.f32 %v109, %v141
    %v143 = vlog2.pop %v140
    %v144 = vmul.f32 %v143, 0.6931472
    %v145 = vadd.f32 %v135, %v144
    %v146 = vrcp.pop %v140
    %v147 = vmul.f32 %v142, %v146
    %v148 = vmul.f32 %v137, %v147
    %v149 = vsub.f32 %v138, %v148
    %v150 = vmul.f32 %v107, %v107
    %v151 = vmul.f32 %v150, %v106
    %v152 = vrot.slane %v151, 4
    %v153 = vadd.f32 %v151, %v152
    %v154 = vrot.slane %v153, 2
    %v155 = vadd.f32 %v153, %v154
    %v156 = vrot.slane %v155, 1
    %v157 = vadd.f32 %v155, %v156
    %v158 = vmul.f32 %v108, %v107
    %v159 = vrot.slane %v158, 4
    %v160 = vadd.f32 %v158, %v159
    %v161 = vrot.slane %v160, 2
    %v162 = vadd.f32 %v160, %v161
    %v163 = vrot.slane %v162, 1
    %v164 = vadd.f32 %v162, %v163
    %v165 = vmul.f32 %v149, %v107
    %v166 = vrot.slane %v165, 4
    %v167 = vadd.f32 %v165, %v166
    %v168 = vrot.slane %v167, 2
    %v169 = vadd.f32 %v167, %v168
    %v170 = vrot.slane %v169, 1
    %v171 = vadd.f32 %v169, %v170
    %v172 = vmul.f32 %v164, %v171
    %v173 = vadd.f32 %v172, 0.0
    %v174 = vmul.f32 %v109, %v107
    %v175 = vrot.slane %v174, 4
    %v176 = vadd.f32 %v174, %v175
    %v177 = vrot.slane %v176, 2
    %v178 = vadd.f32 %v176, %v177
    %v179 = vrot.slane %v178, 1
    %v180 = vadd.f32 %v178, %v179
    %v181 = vmul.f32 %v147, %v107
    %v182 = vrot.slane %v181, 4
    %v183 = vadd.f32 %v181, %v182
    %v184 = vrot.slane %v183, 2
    %v185 = vadd.f32 %v183, %v184
    %v186 = vrot.slane %v185, 1
    %v187 = vadd.f32 %v185, %v186
    %v188 = vmul.f32 %v180, %v187
    %v189 = vadd.f32 %v173, %v188
    %v190 = vsub.f32 %v157, %v189
    %v191 = vlog2.pop %v102
    %v192 = vmul.f32 %v191, 0.6931472
    %v193 = vrot.slane %v192, 4
    %v194 = vadd.f32 %v192, %v193
    %v195 = vrot.slane %v194, 2
    %v196 = vadd.f32 %v194, %v195
    %v197 = vrot.slane %v196, 1
    %v198 = vadd.f32 %v196, %v197
    %v199 = vadd.f32 %v145, %v198
    %v200 = vadd.f32 %v199, 14.703016
    %v201 = vadd.f32 %v200, %v190
    %v202 = vmul.f32 %v201, -0.5
    %v203 = vadd.f32 %v100, %v202
    %204 = vst [vmem:[#allocation2] sm:$0x1] %v203
    %v205 = vlaneseq
    %v206 = vshrl.u32 %v205, 7
    %v207 = vsub.s32 0, %v206
    %v208 = vrot.slane %v108, %v207
    %v209 = vmul.f32 %v208, %v149
    %v210 = vlaneseq
    %v211 = vshrl.u32 %v210, 7
    %v212 = vsub.s32 0, %v211
    %v213 = vrot.slane %v109, %v212
    %v214 = vmul.f32 %v213, %v147
    %v215 = vadd.f32 %v209, %v214
    %v216 = vand.u32 2147483647, %v215
    %v217 = vrot.slane %v216, 4
    %v218 = vadd.f32 %v216, %v217
    %v219 = vrot.slane %v218, 2
    %v220 = vadd.f32 %v218, %v219
    %v221 = vrot.slane %v220, 1
    %v222 = vadd.f32 %v220, %v221
    %v223 = vsub.f32 %v222, %v216
    %v224 = vadd.f32 %v223, 0.0
    %v225 = vlaneseq
    %v226 = vshrl.u32 %v225, 7
    %v227 = vsub.s32 1, %v226
    %v228 = vrot.slane %v108, %v227
    %v229 = vmul.f32 %v228, %v149
    %v230 = vlaneseq
    %v231 = vshrl.u32 %v230, 7
    %v232 = vsub.s32 1, %v231
    %v233 = vrot.slane %v109, %v232
    %v234 = vmul.f32 %v233, %v147
    %v235 = vadd.f32 %v229, %v234
    %v236 = vand.u32 2147483647, %v235
    %v237 = vrot.slane %v236, 4
    %v238 = vadd.f32 %v236, %v237
    %v239 = vrot.slane %v238, 2
    %v240 = vadd.f32 %v238, %v239
    %v241 = vrot.slane %v240, 1
    %v242 = vadd.f32 %v240, %v241
    %v243 = vsub.f32 %v242, %v236
    %v245 = vrot.slane %v243, 1
    %v247 = vadd.f32 %v224, %v245
    %v248 = vlaneseq
    %v249 = vshrl.u32 %v248, 7
    %v250 = vsub.s32 2, %v249
    %v251 = vrot.slane %v108, %v250
    %v252 = vmul.f32 %v251, %v149
    %v253 = vlaneseq
    %v254 = vshrl.u32 %v253, 7
    %v255 = vsub.s32 2, %v254
    %v256 = vrot.slane %v109, %v255
    %v257 = vmul.f32 %v256, %v147
    %v258 = vadd.f32 %v252, %v257
    %v259 = vand.u32 2147483647, %v258
    %v260 = vrot.slane %v259, 4
    %v261 = vadd.f32 %v259, %v260
    %v262 = vrot.slane %v261, 2
    %v263 = vadd.f32 %v261, %v262
    %v264 = vrot.slane %v263, 1
    %v265 = vadd.f32 %v263, %v264
    %v266 = vsub.f32 %v265, %v259
    %v268 = vrot.slane %v266, 2
    %v270 = vadd.f32 %v247, %v268
    %v271 = vlaneseq
    %v272 = vshrl.u32 %v271, 7
    %v273 = vsub.s32 3, %v272
    %v274 = vrot.slane %v108, %v273
    %v275 = vmul.f32 %v274, %v149
    %v276 = vlaneseq
    %v277 = vshrl.u32 %v276, 7
    %v278 = vsub.s32 3, %v277
    %v279 = vrot.slane %v109, %v278
    %v280 = vmul.f32 %v279, %v147
    %v281 = vadd.f32 %v275, %v280
    %v282 = vand.u32 2147483647, %v281
    %v283 = vrot.slane %v282, 4
    %v284 = vadd.f32 %v282, %v283
    %v285 = vrot.slane %v284, 2
    %v286 = vadd.f32 %v284, %v285
    %v287 = vrot.slane %v286, 1
    %v288 = vadd.f32 %v286, %v287
    %v289 = vsub.f32 %v288, %v282
    %v291 = vrot.slane %v289, 3
    %v293 = vadd.f32 %v270, %v291
    %v294 = vlaneseq
    %v295 = vshrl.u32 %v294, 7
    %v296 = vsub.s32 4, %v295
    %v297 = vrot.slane %v108, %v296
    %v298 = vmul.f32 %v297, %v149
    %v299 = vlaneseq
    %v300 = vshrl.u32 %v299, 7
    %v301 = vsub.s32 4, %v300
    %v302 = vrot.slane %v109, %v301
    %v303 = vmul.f32 %v302, %v147
    %v304 = vadd.f32 %v298, %v303
    %v305 = vand.u32 2147483647, %v304
    %v306 = vrot.slane %v305, 4
    %v307 = vadd.f32 %v305, %v306
    %v308 = vrot.slane %v307, 2
    %v309 = vadd.f32 %v307, %v308
    %v310 = vrot.slane %v309, 1
    %v311 = vadd.f32 %v309, %v310
    %v312 = vsub.f32 %v311, %v305
    %v314 = vrot.slane %v312, 4
    %v316 = vadd.f32 %v293, %v314
    %v317 = vlaneseq
    %v318 = vshrl.u32 %v317, 7
    %v319 = vsub.s32 5, %v318
    %v320 = vrot.slane %v108, %v319
    %v321 = vmul.f32 %v320, %v149
    %v322 = vlaneseq
    %v323 = vshrl.u32 %v322, 7
    %v324 = vsub.s32 5, %v323
    %v325 = vrot.slane %v109, %v324
    %v326 = vmul.f32 %v325, %v147
    %v327 = vadd.f32 %v321, %v326
    %v328 = vand.u32 2147483647, %v327
    %v329 = vrot.slane %v328, 4
    %v330 = vadd.f32 %v328, %v329
    %v331 = vrot.slane %v330, 2
    %v332 = vadd.f32 %v330, %v331
    %v333 = vrot.slane %v332, 1
    %v334 = vadd.f32 %v332, %v333
    %v335 = vsub.f32 %v334, %v328
    %v337 = vrot.slane %v335, 5
    %v339 = vadd.f32 %v316, %v337
    %v340 = vlaneseq
    %v341 = vshrl.u32 %v340, 7
    %v342 = vsub.s32 6, %v341
    %v343 = vrot.slane %v108, %v342
    %v344 = vmul.f32 %v343, %v149
    %v345 = vlaneseq
    %v346 = vshrl.u32 %v345, 7
    %v347 = vsub.s32 6, %v346
    %v348 = vrot.slane %v109, %v347
    %v349 = vmul.f32 %v348, %v147
    %v350 = vadd.f32 %v344, %v349
    %v351 = vand.u32 2147483647, %v350
    %v352 = vrot.slane %v351, 4
    %v353 = vadd.f32 %v351, %v352
    %v354 = vrot.slane %v353, 2
    %v355 = vadd.f32 %v353, %v354
    %v356 = vrot.slane %v355, 1
    %v357 = vadd.f32 %v355, %v356
    %v358 = vsub.f32 %v357, %v351
    %v360 = vrot.slane %v358, 6
    %v362 = vadd.f32 %v339, %v360
    %v363 = vlaneseq
    %v364 = vshrl.u32 %v363, 7
    %v365 = vsub.s32 7, %v364
    %v366 = vrot.slane %v108, %v365
    %v367 = vmul.f32 %v366, %v149
    %v368 = vlaneseq
    %v369 = vshrl.u32 %v368, 7
    %v370 = vsub.s32 7, %v369
    %v371 = vrot.slane %v109, %v370
    %v372 = vmul.f32 %v371, %v147
    %v373 = vadd.f32 %v367, %v372
    %v374 = vand.u32 2147483647, %v373
    %v375 = vrot.slane %v374, 4
    %v376 = vadd.f32 %v374, %v375
    %v377 = vrot.slane %v376, 2
    %v378 = vadd.f32 %v376, %v377
    %v379 = vrot.slane %v378, 1
    %v380 = vadd.f32 %v378, %v379
    %v381 = vsub.f32 %v380, %v374
    %v383 = vrot.slane %v381, 7
    %v385 = vadd.f32 %v362, %v383
    %v386 = vlaneseq
    %v387 = vshrl.u32 %v386, 7
    %v388 = vsub.s32 0, %v387
    %v389 = vrot.slane %v101, %v388
    %v390 = vmul.f32 %v389, %v103
    %v391 = vadd.f32 %v390, 0.0
    %s392 = scalar_lea.vmem [#allocation8], 8
    %v393 = vld [vmem:[%s392] sm:$0xff]
    %s394 = scalar_lea.vmem [#allocation6], 8
    %v395 = vld [vmem:[%s394] sm:$0xff]
    %s396 = scalar_lea.vmem [#allocation9], 16
    %v397 = vld [vmem:[%s396] sm:$0xff]
    %v398 = vld [vmem:[%s396 + $0x8] sm:$0xff]
    %v399 = vrcp.pop %v393
    %v400 = vsub.f32 %v85, %v395
    %v401 = vmul.f32 %v397, %v399
    %v402 = vmul.f32 %v398, %v399
    %v403 = vmul.f32 %v401, %v397
    %v404 = vrot.slane %v403, 4
    %v405 = vadd.f32 %v403, %v404
    %v406 = vrot.slane %v405, 2
    %v407 = vadd.f32 %v405, %v406
    %v408 = vrot.slane %v407, 1
    %v409 = vadd.f32 %v407, %v408
    %v410 = vadd.f32 %v409, 1.0
    %v411 = vmul.f32 %v402, %v397
    %v412 = vrot.slane %v411, 4
    %v413 = vadd.f32 %v411, %v412
    %v414 = vrot.slane %v413, 2
    %v415 = vadd.f32 %v413, %v414
    %v416 = vrot.slane %v415, 1
    %v417 = vadd.f32 %v415, %v416
    %v418 = vmul.f32 %v402, %v398
    %v419 = vrot.slane %v418, 4
    %v420 = vadd.f32 %v418, %v419
    %v421 = vrot.slane %v420, 2
    %v422 = vadd.f32 %v420, %v421
    %v423 = vrot.slane %v422, 1
    %v424 = vadd.f32 %v422, %v423
    %v425 = vadd.f32 %v424, 1.0
    %v426 = vlog2.pop %v410
    %v427 = vmul.f32 %v426, 0.6931472
    %v428 = vadd.f32 %v427, 0.0
    %v429 = vrcp.pop %v410
    %v430 = vmul.f32 %v417, %v429
    %v431 = vmul.f32 %v401, %v429
    %v432 = vmul.f32 %v417, %v430
    %v433 = vsub.f32 %v425, %v432
    %v434 = vmul.f32 %v417, %v431
    %v435 = vsub.f32 %v402, %v434
    %v436 = vlog2.pop %v433
    %v437 = vmul.f32 %v436, 0.6931472
    %v438 = vadd.f32 %v428, %v437
    %v439 = vrcp.pop %v433
    %v440 = vmul.f32 %v435, %v439
    %v441 = vmul.f32 %v430, %v440
    %v442 = vsub.f32 %v431, %v441
    %v443 = vmul.f32 %v400, %v400
    %v444 = vmul.f32 %v443, %v399
    %v445 = vrot.slane %v444, 4
    %v446 = vadd.f32 %v444, %v445
    %v447 = vrot.slane %v446, 2
    %v448 = vadd.f32 %v446, %v447
    %v449 = vrot.slane %v448, 1
    %v450 = vadd.f32 %v448, %v449
    %v451 = vmul.f32 %v401, %v400
    %v452 = vrot.slane %v451, 4
    %v453 = vadd.f32 %v451, %v452
    %v454 = vrot.slane %v453, 2
    %v455 = vadd.f32 %v453, %v454
    %v456 = vrot.slane %v455, 1
    %v457 = vadd.f32 %v455, %v456
    %v458 = vmul.f32 %v442, %v400
    %v459 = vrot.slane %v458, 4
    %v460 = vadd.f32 %v458, %v459
    %v461 = vrot.slane %v460, 2
    %v462 = vadd.f32 %v460, %v461
    %v463 = vrot.slane %v462, 1
    %v464 = vadd.f32 %v462, %v463
    %v465 = vmul.f32 %v457, %v464
    %v466 = vadd.f32 %v465, 0.0
    %v467 = vmul.f32 %v402, %v400
    %v468 = vrot.slane %v467, 4
    %v469 = vadd.f32 %v467, %v468
    %v470 = vrot.slane %v469, 2
    %v471 = vadd.f32 %v469, %v470
    %v472 = vrot.slane %v471, 1
    %v473 = vadd.f32 %v471, %v472
    %v474 = vmul.f32 %v440, %v400
    %v475 = vrot.slane %v474, 4
    %v476 = vadd.f32 %v474, %v475
    %v477 = vrot.slane %v476, 2
    %v478 = vadd.f32 %v476, %v477
    %v479 = vrot.slane %v478, 1
    %v480 = vadd.f32 %v478, %v479
    %v481 = vmul.f32 %v473, %v480
    %v482 = vadd.f32 %v466, %v481
    %v483 = vsub.f32 %v450, %v482
    %v484 = vlog2.pop %v393
    %v485 = vmul.f32 %v484, 0.6931472
    %v486 = vrot.slane %v485, 4
    %v487 = vadd.f32 %v485, %v486
    %v488 = vrot.slane %v487, 2
    %v489 = vadd.f32 %v487, %v488
    %v490 = vrot.slane %v489, 1
    %v491 = vadd.f32 %v489, %v490
    %v492 = vadd.f32 %v438, %v491
    %v493 = vadd.f32 %v492, 14.703016
    %v494 = vadd.f32 %v493, %v483
    %v495 = vmul.f32 %v494, -0.5
    %v496 = vadd.f32 %v100, %v495
    %497 = vst [vmem:[#allocation2] sm:$0x2] %v496
    %v498 = vlaneseq
    %v499 = vshrl.u32 %v498, 7
    %v500 = vsub.s32 0, %v499
    %v501 = vrot.slane %v401, %v500
    %v502 = vmul.f32 %v501, %v442
    %v503 = vlaneseq
    %v504 = vshrl.u32 %v503, 7
    %v505 = vsub.s32 0, %v504
    %v506 = vrot.slane %v402, %v505
    %v507 = vmul.f32 %v506, %v440
    %v508 = vadd.f32 %v502, %v507
    %v509 = vand.u32 2147483647, %v508
    %v510 = vrot.slane %v509, 4
    %v511 = vadd.f32 %v509, %v510
    %v512 = vrot.slane %v511, 2
    %v513 = vadd.f32 %v511, %v512
    %v514 = vrot.slane %v513, 1
    %v515 = vadd.f32 %v513, %v514
    %v516 = vsub.f32 %v515, %v509
    %v517 = vadd.f32 %v385, %v516
    %v518 = vlaneseq
    %v519 = vshrl.u32 %v518, 7
    %v520 = vsub.s32 1, %v519
    %v521 = vrot.slane %v401, %v520
    %v522 = vmul.f32 %v521, %v442
    %v523 = vlaneseq
    %v524 = vshrl.u32 %v523, 7
    %v525 = vsub.s32 1, %v524
    %v526 = vrot.slane %v402, %v525
    %v527 = vmul.f32 %v526, %v440
    %v528 = vadd.f32 %v522, %v527
    %v529 = vand.u32 2147483647, %v528
    %v530 = vrot.slane %v529, 4
    %v531 = vadd.f32 %v529, %v530
    %v532 = vrot.slane %v531, 2
    %v533 = vadd.f32 %v531, %v532
    %v534 = vrot.slane %v533, 1
    %v535 = vadd.f32 %v533, %v534
    %v536 = vsub.f32 %v535, %v529
    %v538 = vrot.slane %v536, 1
    %v540 = vadd.f32 %v517, %v538
    %v541 = vlaneseq
    %v542 = vshrl.u32 %v541, 7
    %v543 = vsub.s32 2, %v542
    %v544 = vrot.slane %v401, %v543
    %v545 = vmul.f32 %v544, %v442
    %v546 = vlaneseq
    %v547 = vshrl.u32 %v546, 7
    %v548 = vsub.s32 2, %v547
    %v549 = vrot.slane %v402, %v548
    %v550 = vmul.f32 %v549, %v440
    %v551 = vadd.f32 %v545, %v550
    %v552 = vand.u32 2147483647, %v551
    %v553 = vrot.slane %v552, 4
    %v554 = vadd.f32 %v552, %v553
    %v555 = vrot.slane %v554, 2
    %v556 = vadd.f32 %v554, %v555
    %v557 = vrot.slane %v556, 1
    %v558 = vadd.f32 %v556, %v557
    %v559 = vsub.f32 %v558, %v552
    %v561 = vrot.slane %v559, 2
    %v563 = vadd.f32 %v540, %v561
    %v564 = vlaneseq
    %v565 = vshrl.u32 %v564, 7
    %v566 = vsub.s32 3, %v565
    %v567 = vrot.slane %v401, %v566
    %v568 = vmul.f32 %v567, %v442
    %v569 = vlaneseq
    %v570 = vshrl.u32 %v569, 7
    %v571 = vsub.s32 3, %v570
    %v572 = vrot.slane %v402, %v571
    %v573 = vmul.f32 %v572, %v440
    %v574 = vadd.f32 %v568, %v573
    %v575 = vand.u32 2147483647, %v574
    %v576 = vrot.slane %v575, 4
    %v577 = vadd.f32 %v575, %v576
    %v578 = vrot.slane %v577, 2
    %v579 = vadd.f32 %v577, %v578
    %v580 = vrot.slane %v579, 1
    %v581 = vadd.f32 %v579, %v580
    %v582 = vsub.f32 %v581, %v575
    %v584 = vrot.slane %v582, 3
    %v586 = vadd.f32 %v563, %v584
    %v587 = vlaneseq
    %v588 = vshrl.u32 %v587, 7
    %v589 = vsub.s32 4, %v588
    %v590 = vrot.slane %v401, %v589
    %v591 = vmul.f32 %v590, %v442
    %v592 = vlaneseq
    %v593 = vshrl.u32 %v592, 7
    %v594 = vsub.s32 4, %v593
    %v595 = vrot.slane %v402, %v594
    %v596 = vmul.f32 %v595, %v440
    %v597 = vadd.f32 %v591, %v596
    %v598 = vand.u32 2147483647, %v597
    %v599 = vrot.slane %v598, 4
    %v600 = vadd.f32 %v598, %v599
    %v601 = vrot.slane %v600, 2
    %v602 = vadd.f32 %v600, %v601
    %v603 = vrot.slane %v602, 1
    %v604 = vadd.f32 %v602, %v603
    %v605 = vsub.f32 %v604, %v598
    %v607 = vrot.slane %v605, 4
    %v609 = vadd.f32 %v586, %v607
    %v610 = vlaneseq
    %v611 = vshrl.u32 %v610, 7
    %v612 = vsub.s32 5, %v611
    %v613 = vrot.slane %v401, %v612
    %v614 = vmul.f32 %v613, %v442
    %v615 = vlaneseq
    %v616 = vshrl.u32 %v615, 7
    %v617 = vsub.s32 5, %v616
    %v618 = vrot.slane %v402, %v617
    %v619 = vmul.f32 %v618, %v440
    %v620 = vadd.f32 %v614, %v619
    %v621 = vand.u32 2147483647, %v620
    %v622 = vrot.slane %v621, 4
    %v623 = vadd.f32 %v621, %v622
    %v624 = vrot.slane %v623, 2
    %v625 = vadd.f32 %v623, %v624
    %v626 = vrot.slane %v625, 1
    %v627 = vadd.f32 %v625, %v626
    %v628 = vsub.f32 %v627, %v621
    %v630 = vrot.slane %v628, 5
    %v632 = vadd.f32 %v609, %v630
    %v633 = vlaneseq
    %v634 = vshrl.u32 %v633, 7
    %v635 = vsub.s32 6, %v634
    %v636 = vrot.slane %v401, %v635
    %v637 = vmul.f32 %v636, %v442
    %v638 = vlaneseq
    %v639 = vshrl.u32 %v638, 7
    %v640 = vsub.s32 6, %v639
    %v641 = vrot.slane %v402, %v640
    %v642 = vmul.f32 %v641, %v440
    %v643 = vadd.f32 %v637, %v642
    %v644 = vand.u32 2147483647, %v643
    %v645 = vrot.slane %v644, 4
    %v646 = vadd.f32 %v644, %v645
    %v647 = vrot.slane %v646, 2
    %v648 = vadd.f32 %v646, %v647
    %v649 = vrot.slane %v648, 1
    %v650 = vadd.f32 %v648, %v649
    %v651 = vsub.f32 %v650, %v644
    %v653 = vrot.slane %v651, 6
    %v655 = vadd.f32 %v632, %v653
    %v656 = vlaneseq
    %v657 = vshrl.u32 %v656, 7
    %v658 = vsub.s32 7, %v657
    %v659 = vrot.slane %v401, %v658
    %v660 = vmul.f32 %v659, %v442
    %v661 = vlaneseq
    %v662 = vshrl.u32 %v661, 7
    %v663 = vsub.s32 7, %v662
    %v664 = vrot.slane %v402, %v663
    %v665 = vmul.f32 %v664, %v440
    %v666 = vadd.f32 %v660, %v665
    %v667 = vand.u32 2147483647, %v666
    %v668 = vrot.slane %v667, 4
    %v669 = vadd.f32 %v667, %v668
    %v670 = vrot.slane %v669, 2
    %v671 = vadd.f32 %v669, %v670
    %v672 = vrot.slane %v671, 1
    %v673 = vadd.f32 %v671, %v672
    %v674 = vsub.f32 %v673, %v667
    %v676 = vrot.slane %v674, 7
    %v678 = vadd.f32 %v655, %v676
    %v679 = vlaneseq
    %v680 = vshrl.u32 %v679, 7
    %v681 = vsub.s32 1, %v680
    %v682 = vrot.slane %v101, %v681
    %v683 = vmul.f32 %v682, %v395
    %v684 = vadd.f32 %v391, %v683
    %s685 = scalar_lea.vmem [#allocation8], 16
    %v686 = vld [vmem:[%s685] sm:$0xff]
    %s687 = scalar_lea.vmem [#allocation6], 16
    %v688 = vld [vmem:[%s687] sm:$0xff]
    %s689 = scalar_lea.vmem [#allocation9], 32
    %v690 = vld [vmem:[%s689] sm:$0xff]
    %v691 = vld [vmem:[%s689 + $0x8] sm:$0xff]
    %v692 = vrcp.pop %v686
    %v693 = vsub.f32 %v85, %v688
    %v694 = vmul.f32 %v690, %v692
    %v695 = vmul.f32 %v691, %v692
    %v696 = vmul.f32 %v694, %v690
    %v697 = vrot.slane %v696, 4
    %v698 = vadd.f32 %v696, %v697
    %v699 = vrot.slane %v698, 2
    %v700 = vadd.f32 %v698, %v699
    %v701 = vrot.slane %v700, 1
    %v702 = vadd.f32 %v700, %v701
    %v703 = vadd.f32 %v702, 1.0
    %v704 = vmul.f32 %v695, %v690
    %v705 = vrot.slane %v704, 4
    %v706 = vadd.f32 %v704, %v705
    %v707 = vrot.slane %v706, 2
    %v708 = vadd.f32 %v706, %v707
    %v709 = vrot.slane %v708, 1
    %v710 = vadd.f32 %v708, %v709
    %v711 = vmul.f32 %v695, %v691
    %v712 = vrot.slane %v711, 4
    %v713 = vadd.f32 %v711, %v712
    %v714 = vrot.slane %v713, 2
    %v715 = vadd.f32 %v713, %v714
    %v716 = vrot.slane %v715, 1
    %v717 = vadd.f32 %v715, %v716
    %v718 = vadd.f32 %v717, 1.0
    %v719 = vlog2.pop %v703
    %v720 = vmul.f32 %v719, 0.6931472
    %v721 = vadd.f32 %v720, 0.0
    %v722 = vrcp.pop %v703
    %v723 = vmul.f32 %v710, %v722
    %v724 = vmul.f32 %v694, %v722
    %v725 = vmul.f32 %v710, %v723
    %v726 = vsub.f32 %v718, %v725
    %v727 = vmul.f32 %v710, %v724
    %v728 = vsub.f32 %v695, %v727
    %v729 = vlog2.pop %v726
    %v730 = vmul.f32 %v729, 0.6931472
    %v731 = vadd.f32 %v721, %v730
    %v732 = vrcp.pop %v726
    %v733 = vmul.f32 %v728, %v732
    %v734 = vmul.f32 %v723, %v733
    %v735 = vsub.f32 %v724, %v734
    %v736 = vmul.f32 %v693, %v693
    %v737 = vmul.f32 %v736, %v692
    %v738 = vrot.slane %v737, 4
    %v739 = vadd.f32 %v737, %v738
    %v740 = vrot.slane %v739, 2
    %v741 = vadd.f32 %v739, %v740
    %v742 = vrot.slane %v741, 1
    %v743 = vadd.f32 %v741, %v742
    %v744 = vmul.f32 %v694, %v693
    %v745 = vrot.slane %v744, 4
    %v746 = vadd.f32 %v744, %v745
    %v747 = vrot.slane %v746, 2
    %v748 = vadd.f32 %v746, %v747
    %v749 = vrot.slane %v748, 1
    %v750 = vadd.f32 %v748, %v749
    %v751 = vmul.f32 %v735, %v693
    %v752 = vrot.slane %v751, 4
    %v753 = vadd.f32 %v751, %v752
    %v754 = vrot.slane %v753, 2
    %v755 = vadd.f32 %v753, %v754
    %v756 = vrot.slane %v755, 1
    %v757 = vadd.f32 %v755, %v756
    %v758 = vmul.f32 %v750, %v757
    %v759 = vadd.f32 %v758, 0.0
    %v760 = vmul.f32 %v695, %v693
    %v761 = vrot.slane %v760, 4
    %v762 = vadd.f32 %v760, %v761
    %v763 = vrot.slane %v762, 2
    %v764 = vadd.f32 %v762, %v763
    %v765 = vrot.slane %v764, 1
    %v766 = vadd.f32 %v764, %v765
    %v767 = vmul.f32 %v733, %v693
    %v768 = vrot.slane %v767, 4
    %v769 = vadd.f32 %v767, %v768
    %v770 = vrot.slane %v769, 2
    %v771 = vadd.f32 %v769, %v770
    %v772 = vrot.slane %v771, 1
    %v773 = vadd.f32 %v771, %v772
    %v774 = vmul.f32 %v766, %v773
    %v775 = vadd.f32 %v759, %v774
    %v776 = vsub.f32 %v743, %v775
    %v777 = vlog2.pop %v686
    %v778 = vmul.f32 %v777, 0.6931472
    %v779 = vrot.slane %v778, 4
    %v780 = vadd.f32 %v778, %v779
    %v781 = vrot.slane %v780, 2
    %v782 = vadd.f32 %v780, %v781
    %v783 = vrot.slane %v782, 1
    %v784 = vadd.f32 %v782, %v783
    %v785 = vadd.f32 %v731, %v784
    %v786 = vadd.f32 %v785, 14.703016
    %v787 = vadd.f32 %v786, %v776
    %v788 = vmul.f32 %v787, -0.5
    %v789 = vadd.f32 %v100, %v788
    %790 = vst [vmem:[#allocation2] sm:$0x4] %v789
    %v791 = vlaneseq
    %v792 = vshrl.u32 %v791, 7
    %v793 = vsub.s32 0, %v792
    %v794 = vrot.slane %v694, %v793
    %v795 = vmul.f32 %v794, %v735
    %v796 = vlaneseq
    %v797 = vshrl.u32 %v796, 7
    %v798 = vsub.s32 0, %v797
    %v799 = vrot.slane %v695, %v798
    %v800 = vmul.f32 %v799, %v733
    %v801 = vadd.f32 %v795, %v800
    %v802 = vand.u32 2147483647, %v801
    %v803 = vrot.slane %v802, 4
    %v804 = vadd.f32 %v802, %v803
    %v805 = vrot.slane %v804, 2
    %v806 = vadd.f32 %v804, %v805
    %v807 = vrot.slane %v806, 1
    %v808 = vadd.f32 %v806, %v807
    %v809 = vsub.f32 %v808, %v802
    %v810 = vadd.f32 %v678, %v809
    %v811 = vlaneseq
    %v812 = vshrl.u32 %v811, 7
    %v813 = vsub.s32 1, %v812
    %v814 = vrot.slane %v694, %v813
    %v815 = vmul.f32 %v814, %v735
    %v816 = vlaneseq
    %v817 = vshrl.u32 %v816, 7
    %v818 = vsub.s32 1, %v817
    %v819 = vrot.slane %v695, %v818
    %v820 = vmul.f32 %v819, %v733
    %v821 = vadd.f32 %v815, %v820
    %v822 = vand.u32 2147483647, %v821
    %v823 = vrot.slane %v822, 4
    %v824 = vadd.f32 %v822, %v823
    %v825 = vrot.slane %v824, 2
    %v826 = vadd.f32 %v824, %v825
    %v827 = vrot.slane %v826, 1
    %v828 = vadd.f32 %v826, %v827
    %v829 = vsub.f32 %v828, %v822
    %v831 = vrot.slane %v829, 1
    %v833 = vadd.f32 %v810, %v831
    %v834 = vlaneseq
    %v835 = vshrl.u32 %v834, 7
    %v836 = vsub.s32 2, %v835
    %v837 = vrot.slane %v694, %v836
    %v838 = vmul.f32 %v837, %v735
    %v839 = vlaneseq
    %v840 = vshrl.u32 %v839, 7
    %v841 = vsub.s32 2, %v840
    %v842 = vrot.slane %v695, %v841
    %v843 = vmul.f32 %v842, %v733
    %v844 = vadd.f32 %v838, %v843
    %v845 = vand.u32 2147483647, %v844
    %v846 = vrot.slane %v845, 4
    %v847 = vadd.f32 %v845, %v846
    %v848 = vrot.slane %v847, 2
    %v849 = vadd.f32 %v847, %v848
    %v850 = vrot.slane %v849, 1
    %v851 = vadd.f32 %v849, %v850
    %v852 = vsub.f32 %v851, %v845
    %v854 = vrot.slane %v852, 2
    %v856 = vadd.f32 %v833, %v854
    %v857 = vlaneseq
    %v858 = vshrl.u32 %v857, 7
    %v859 = vsub.s32 3, %v858
    %v860 = vrot.slane %v694, %v859
    %v861 = vmul.f32 %v860, %v735
    %v862 = vlaneseq
    %v863 = vshrl.u32 %v862, 7
    %v864 = vsub.s32 3, %v863
    %v865 = vrot.slane %v695, %v864
    %v866 = vmul.f32 %v865, %v733
    %v867 = vadd.f32 %v861, %v866
    %v868 = vand.u32 2147483647, %v867
    %v869 = vrot.slane %v868, 4
    %v870 = vadd.f32 %v868, %v869
    %v871 = vrot.slane %v870, 2
    %v872 = vadd.f32 %v870, %v871
    %v873 = vrot.slane %v872, 1
    %v874 = vadd.f32 %v872, %v873
    %v875 = vsub.f32 %v874, %v868
    %v877 = vrot.slane %v875, 3
    %v879 = vadd.f32 %v856, %v877
    %v880 = vlaneseq
    %v881 = vshrl.u32 %v880, 7
    %v882 = vsub.s32 4, %v881
    %v883 = vrot.slane %v694, %v882
    %v884 = vmul.f32 %v883, %v735
    %v885 = vlaneseq
    %v886 = vshrl.u32 %v885, 7
    %v887 = vsub.s32 4, %v886
    %v888 = vrot.slane %v695, %v887
    %v889 = vmul.f32 %v888, %v733
    %v890 = vadd.f32 %v884, %v889
    %v891 = vand.u32 2147483647, %v890
    %v892 = vrot.slane %v891, 4
    %v893 = vadd.f32 %v891, %v892
    %v894 = vrot.slane %v893, 2
    %v895 = vadd.f32 %v893, %v894
    %v896 = vrot.slane %v895, 1
    %v897 = vadd.f32 %v895, %v896
    %v898 = vsub.f32 %v897, %v891
    %v900 = vrot.slane %v898, 4
    %v902 = vadd.f32 %v879, %v900
    %v903 = vlaneseq
    %v904 = vshrl.u32 %v903, 7
    %v905 = vsub.s32 5, %v904
    %v906 = vrot.slane %v694, %v905
    %v907 = vmul.f32 %v906, %v735
    %v908 = vlaneseq
    %v909 = vshrl.u32 %v908, 7
    %v910 = vsub.s32 5, %v909
    %v911 = vrot.slane %v695, %v910
    %v912 = vmul.f32 %v911, %v733
    %v913 = vadd.f32 %v907, %v912
    %v914 = vand.u32 2147483647, %v913
    %v915 = vrot.slane %v914, 4
    %v916 = vadd.f32 %v914, %v915
    %v917 = vrot.slane %v916, 2
    %v918 = vadd.f32 %v916, %v917
    %v919 = vrot.slane %v918, 1
    %v920 = vadd.f32 %v918, %v919
    %v921 = vsub.f32 %v920, %v914
    %v923 = vrot.slane %v921, 5
    %v925 = vadd.f32 %v902, %v923
    %v926 = vlaneseq
    %v927 = vshrl.u32 %v926, 7
    %v928 = vsub.s32 6, %v927
    %v929 = vrot.slane %v694, %v928
    %v930 = vmul.f32 %v929, %v735
    %v931 = vlaneseq
    %v932 = vshrl.u32 %v931, 7
    %v933 = vsub.s32 6, %v932
    %v934 = vrot.slane %v695, %v933
    %v935 = vmul.f32 %v934, %v733
    %v936 = vadd.f32 %v930, %v935
    %v937 = vand.u32 2147483647, %v936
    %v938 = vrot.slane %v937, 4
    %v939 = vadd.f32 %v937, %v938
    %v940 = vrot.slane %v939, 2
    %v941 = vadd.f32 %v939, %v940
    %v942 = vrot.slane %v941, 1
    %v943 = vadd.f32 %v941, %v942
    %v944 = vsub.f32 %v943, %v937
    %v946 = vrot.slane %v944, 6
    %v948 = vadd.f32 %v925, %v946
    %v949 = vlaneseq
    %v950 = vshrl.u32 %v949, 7
    %v951 = vsub.s32 7, %v950
    %v952 = vrot.slane %v694, %v951
    %v953 = vmul.f32 %v952, %v735
    %v954 = vlaneseq
    %v955 = vshrl.u32 %v954, 7
    %v956 = vsub.s32 7, %v955
    %v957 = vrot.slane %v695, %v956
    %v958 = vmul.f32 %v957, %v733
    %v959 = vadd.f32 %v953, %v958
    %v960 = vand.u32 2147483647, %v959
    %v961 = vrot.slane %v960, 4
    %v962 = vadd.f32 %v960, %v961
    %v963 = vrot.slane %v962, 2
    %v964 = vadd.f32 %v962, %v963
    %v965 = vrot.slane %v964, 1
    %v966 = vadd.f32 %v964, %v965
    %v967 = vsub.f32 %v966, %v960
    %v969 = vrot.slane %v967, 7
    %v971 = vadd.f32 %v948, %v969
    %v972 = vlaneseq
    %v973 = vshrl.u32 %v972, 7
    %v974 = vsub.s32 2, %v973
    %v975 = vrot.slane %v101, %v974
    %v976 = vmul.f32 %v975, %v688
    %v977 = vadd.f32 %v684, %v976
    %s978 = scalar_lea.vmem [#allocation8], 24
    %v979 = vld [vmem:[%s978] sm:$0xff]
    %s980 = scalar_lea.vmem [#allocation6], 24
    %v981 = vld [vmem:[%s980] sm:$0xff]
    %s982 = scalar_lea.vmem [#allocation9], 48
    %v983 = vld [vmem:[%s982] sm:$0xff]
    %v984 = vld [vmem:[%s982 + $0x8] sm:$0xff]
    %v985 = vrcp.pop %v979
    %v986 = vsub.f32 %v85, %v981
    %v987 = vmul.f32 %v983, %v985
    %v988 = vmul.f32 %v984, %v985
    %v989 = vmul.f32 %v987, %v983
    %v990 = vrot.slane %v989, 4
    %v991 = vadd.f32 %v989, %v990
    %v992 = vrot.slane %v991, 2
    %v993 = vadd.f32 %v991, %v992
    %v994 = vrot.slane %v993, 1
    %v995 = vadd.f32 %v993, %v994
    %v996 = vadd.f32 %v995, 1.0
    %v997 = vmul.f32 %v988, %v983
    %v998 = vrot.slane %v997, 4
    %v999 = vadd.f32 %v997, %v998
    %v1000 = vrot.slane %v999, 2
    %v1001 = vadd.f32 %v999, %v1000
    %v1002 = vrot.slane %v1001, 1
    %v1003 = vadd.f32 %v1001, %v1002
    %v1004 = vmul.f32 %v988, %v984
    %v1005 = vrot.slane %v1004, 4
    %v1006 = vadd.f32 %v1004, %v1005
    %v1007 = vrot.slane %v1006, 2
    %v1008 = vadd.f32 %v1006, %v1007
    %v1009 = vrot.slane %v1008, 1
    %v1010 = vadd.f32 %v1008, %v1009
    %v1011 = vadd.f32 %v1010, 1.0
    %v1012 = vlog2.pop %v996
    %v1013 = vmul.f32 %v1012, 0.6931472
    %v1014 = vadd.f32 %v1013, 0.0
    %v1015 = vrcp.pop %v996
    %v1016 = vmul.f32 %v1003, %v1015
    %v1017 = vmul.f32 %v987, %v1015
    %v1018 = vmul.f32 %v1003, %v1016
    %v1019 = vsub.f32 %v1011, %v1018
    %v1020 = vmul.f32 %v1003, %v1017
    %v1021 = vsub.f32 %v988, %v1020
    %v1022 = vlog2.pop %v1019
    %v1023 = vmul.f32 %v1022, 0.6931472
    %v1024 = vadd.f32 %v1014, %v1023
    %v1025 = vrcp.pop %v1019
    %v1026 = vmul.f32 %v1021, %v1025
    %v1027 = vmul.f32 %v1016, %v1026
    %v1028 = vsub.f32 %v1017, %v1027
    %v1029 = vmul.f32 %v986, %v986
    %v1030 = vmul.f32 %v1029, %v985
    %v1031 = vrot.slane %v1030, 4
    %v1032 = vadd.f32 %v1030, %v1031
    %v1033 = vrot.slane %v1032, 2
    %v1034 = vadd.f32 %v1032, %v1033
    %v1035 = vrot.slane %v1034, 1
    %v1036 = vadd.f32 %v1034, %v1035
    %v1037 = vmul.f32 %v987, %v986
    %v1038 = vrot.slane %v1037, 4
    %v1039 = vadd.f32 %v1037, %v1038
    %v1040 = vrot.slane %v1039, 2
    %v1041 = vadd.f32 %v1039, %v1040
    %v1042 = vrot.slane %v1041, 1
    %v1043 = vadd.f32 %v1041, %v1042
    %v1044 = vmul.f32 %v1028, %v986
    %v1045 = vrot.slane %v1044, 4
    %v1046 = vadd.f32 %v1044, %v1045
    %v1047 = vrot.slane %v1046, 2
    %v1048 = vadd.f32 %v1046, %v1047
    %v1049 = vrot.slane %v1048, 1
    %v1050 = vadd.f32 %v1048, %v1049
    %v1051 = vmul.f32 %v1043, %v1050
    %v1052 = vadd.f32 %v1051, 0.0
    %v1053 = vmul.f32 %v988, %v986
    %v1054 = vrot.slane %v1053, 4
    %v1055 = vadd.f32 %v1053, %v1054
    %v1056 = vrot.slane %v1055, 2
    %v1057 = vadd.f32 %v1055, %v1056
    %v1058 = vrot.slane %v1057, 1
    %v1059 = vadd.f32 %v1057, %v1058
    %v1060 = vmul.f32 %v1026, %v986
    %v1061 = vrot.slane %v1060, 4
    %v1062 = vadd.f32 %v1060, %v1061
    %v1063 = vrot.slane %v1062, 2
    %v1064 = vadd.f32 %v1062, %v1063
    %v1065 = vrot.slane %v1064, 1
    %v1066 = vadd.f32 %v1064, %v1065
    %v1067 = vmul.f32 %v1059, %v1066
    %v1068 = vadd.f32 %v1052, %v1067
    %v1069 = vsub.f32 %v1036, %v1068
    %v1070 = vlog2.pop %v979
    %v1071 = vmul.f32 %v1070, 0.6931472
    %v1072 = vrot.slane %v1071, 4
    %v1073 = vadd.f32 %v1071, %v1072
    %v1074 = vrot.slane %v1073, 2
    %v1075 = vadd.f32 %v1073, %v1074
    %v1076 = vrot.slane %v1075, 1
    %v1077 = vadd.f32 %v1075, %v1076
    %v1078 = vadd.f32 %v1024, %v1077
    %v1079 = vadd.f32 %v1078, 14.703016
    %v1080 = vadd.f32 %v1079, %v1069
    %v1081 = vmul.f32 %v1080, -0.5
    %v1082 = vadd.f32 %v100, %v1081
    %1083 = vst [vmem:[#allocation2] sm:$0x8] %v1082
    %v1084 = vlaneseq
    %v1085 = vshrl.u32 %v1084, 7
    %v1086 = vsub.s32 0, %v1085
    %v1087 = vrot.slane %v987, %v1086
    %v1088 = vmul.f32 %v1087, %v1028
    %v1089 = vlaneseq
    %v1090 = vshrl.u32 %v1089, 7
    %v1091 = vsub.s32 0, %v1090
    %v1092 = vrot.slane %v988, %v1091
    %v1093 = vmul.f32 %v1092, %v1026
    %v1094 = vadd.f32 %v1088, %v1093
    %v1095 = vand.u32 2147483647, %v1094
    %v1096 = vrot.slane %v1095, 4
    %v1097 = vadd.f32 %v1095, %v1096
    %v1098 = vrot.slane %v1097, 2
    %v1099 = vadd.f32 %v1097, %v1098
    %v1100 = vrot.slane %v1099, 1
    %v1101 = vadd.f32 %v1099, %v1100
    %v1102 = vsub.f32 %v1101, %v1095
    %v1103 = vadd.f32 %v971, %v1102
    %v1104 = vlaneseq
    %v1105 = vshrl.u32 %v1104, 7
    %v1106 = vsub.s32 1, %v1105
    %v1107 = vrot.slane %v987, %v1106
    %v1108 = vmul.f32 %v1107, %v1028
    %v1109 = vlaneseq
    %v1110 = vshrl.u32 %v1109, 7
    %v1111 = vsub.s32 1, %v1110
    %v1112 = vrot.slane %v988, %v1111
    %v1113 = vmul.f32 %v1112, %v1026
    %v1114 = vadd.f32 %v1108, %v1113
    %v1115 = vand.u32 2147483647, %v1114
    %v1116 = vrot.slane %v1115, 4
    %v1117 = vadd.f32 %v1115, %v1116
    %v1118 = vrot.slane %v1117, 2
    %v1119 = vadd.f32 %v1117, %v1118
    %v1120 = vrot.slane %v1119, 1
    %v1121 = vadd.f32 %v1119, %v1120
    %v1122 = vsub.f32 %v1121, %v1115
    %v1124 = vrot.slane %v1122, 1
    %v1126 = vadd.f32 %v1103, %v1124
    %v1127 = vlaneseq
    %v1128 = vshrl.u32 %v1127, 7
    %v1129 = vsub.s32 2, %v1128
    %v1130 = vrot.slane %v987, %v1129
    %v1131 = vmul.f32 %v1130, %v1028
    %v1132 = vlaneseq
    %v1133 = vshrl.u32 %v1132, 7
    %v1134 = vsub.s32 2, %v1133
    %v1135 = vrot.slane %v988, %v1134
    %v1136 = vmul.f32 %v1135, %v1026
    %v1137 = vadd.f32 %v1131, %v1136
    %v1138 = vand.u32 2147483647, %v1137
    %v1139 = vrot.slane %v1138, 4
    %v1140 = vadd.f32 %v1138, %v1139
    %v1141 = vrot.slane %v1140, 2
    %v1142 = vadd.f32 %v1140, %v1141
    %v1143 = vrot.slane %v1142, 1
    %v1144 = vadd.f32 %v1142, %v1143
    %v1145 = vsub.f32 %v1144, %v1138
    %v1147 = vrot.slane %v1145, 2
    %v1149 = vadd.f32 %v1126, %v1147
    %v1150 = vlaneseq
    %v1151 = vshrl.u32 %v1150, 7
    %v1152 = vsub.s32 3, %v1151
    %v1153 = vrot.slane %v987, %v1152
    %v1154 = vmul.f32 %v1153, %v1028
    %v1155 = vlaneseq
    %v1156 = vshrl.u32 %v1155, 7
    %v1157 = vsub.s32 3, %v1156
    %v1158 = vrot.slane %v988, %v1157
    %v1159 = vmul.f32 %v1158, %v1026
    %v1160 = vadd.f32 %v1154, %v1159
    %v1161 = vand.u32 2147483647, %v1160
    %v1162 = vrot.slane %v1161, 4
    %v1163 = vadd.f32 %v1161, %v1162
    %v1164 = vrot.slane %v1163, 2
    %v1165 = vadd.f32 %v1163, %v1164
    %v1166 = vrot.slane %v1165, 1
    %v1167 = vadd.f32 %v1165, %v1166
    %v1168 = vsub.f32 %v1167, %v1161
    %v1170 = vrot.slane %v1168, 3
    %v1172 = vadd.f32 %v1149, %v1170
    %v1173 = vlaneseq
    %v1174 = vshrl.u32 %v1173, 7
    %v1175 = vsub.s32 4, %v1174
    %v1176 = vrot.slane %v987, %v1175
    %v1177 = vmul.f32 %v1176, %v1028
    %v1178 = vlaneseq
    %v1179 = vshrl.u32 %v1178, 7
    %v1180 = vsub.s32 4, %v1179
    %v1181 = vrot.slane %v988, %v1180
    %v1182 = vmul.f32 %v1181, %v1026
    %v1183 = vadd.f32 %v1177, %v1182
    %v1184 = vand.u32 2147483647, %v1183
    %v1185 = vrot.slane %v1184, 4
    %v1186 = vadd.f32 %v1184, %v1185
    %v1187 = vrot.slane %v1186, 2
    %v1188 = vadd.f32 %v1186, %v1187
    %v1189 = vrot.slane %v1188, 1
    %v1190 = vadd.f32 %v1188, %v1189
    %v1191 = vsub.f32 %v1190, %v1184
    %v1193 = vrot.slane %v1191, 4
    %v1195 = vadd.f32 %v1172, %v1193
    %v1196 = vlaneseq
    %v1197 = vshrl.u32 %v1196, 7
    %v1198 = vsub.s32 5, %v1197
    %v1199 = vrot.slane %v987, %v1198
    %v1200 = vmul.f32 %v1199, %v1028
    %v1201 = vlaneseq
    %v1202 = vshrl.u32 %v1201, 7
    %v1203 = vsub.s32 5, %v1202
    %v1204 = vrot.slane %v988, %v1203
    %v1205 = vmul.f32 %v1204, %v1026
    %v1206 = vadd.f32 %v1200, %v1205
    %v1207 = vand.u32 2147483647, %v1206
    %v1208 = vrot.slane %v1207, 4
    %v1209 = vadd.f32 %v1207, %v1208
    %v1210 = vrot.slane %v1209, 2
    %v1211 = vadd.f32 %v1209, %v1210
    %v1212 = vrot.slane %v1211, 1
    %v1213 = vadd.f32 %v1211, %v1212
    %v1214 = vsub.f32 %v1213, %v1207
    %v1216 = vrot.slane %v1214, 5
    %v1218 = vadd.f32 %v1195, %v1216
    %v1219 = vlaneseq
    %v1220 = vshrl.u32 %v1219, 7
    %v1221 = vsub.s32 6, %v1220
    %v1222 = vrot.slane %v987, %v1221
    %v1223 = vmul.f32 %v1222, %v1028
    %v1224 = vlaneseq
    %v1225 = vshrl.u32 %v1224, 7
    %v1226 = vsub.s32 6, %v1225
    %v1227 = vrot.slane %v988, %v1226
    %v1228 = vmul.f32 %v1227, %v1026
    %v1229 = vadd.f32 %v1223, %v1228
    %v1230 = vand.u32 2147483647, %v1229
    %v1231 = vrot.slane %v1230, 4
    %v1232 = vadd.f32 %v1230, %v1231
    %v1233 = vrot.slane %v1232, 2
    %v1234 = vadd.f32 %v1232, %v1233
    %v1235 = vrot.slane %v1234, 1
    %v1236 = vadd.f32 %v1234, %v1235
    %v1237 = vsub.f32 %v1236, %v1230
    %v1239 = vrot.slane %v1237, 6
    %v1241 = vadd.f32 %v1218, %v1239
    %v1242 = vlaneseq
    %v1243 = vshrl.u32 %v1242, 7
    %v1244 = vsub.s32 7, %v1243
    %v1245 = vrot.slane %v987, %v1244
    %v1246 = vmul.f32 %v1245, %v1028
    %v1247 = vlaneseq
    %v1248 = vshrl.u32 %v1247, 7
    %v1249 = vsub.s32 7, %v1248
    %v1250 = vrot.slane %v988, %v1249
    %v1251 = vmul.f32 %v1250, %v1026
    %v1252 = vadd.f32 %v1246, %v1251
    %v1253 = vand.u32 2147483647, %v1252
    %v1254 = vrot.slane %v1253, 4
    %v1255 = vadd.f32 %v1253, %v1254
    %v1256 = vrot.slane %v1255, 2
    %v1257 = vadd.f32 %v1255, %v1256
    %v1258 = vrot.slane %v1257, 1
    %v1259 = vadd.f32 %v1257, %v1258
    %v1260 = vsub.f32 %v1259, %v1253
    %v1262 = vrot.slane %v1260, 7
    %v1264 = vadd.f32 %v1241, %v1262
    %v1265 = vlaneseq
    %v1266 = vshrl.u32 %v1265, 7
    %v1267 = vsub.s32 3, %v1266
    %v1268 = vrot.slane %v101, %v1267
    %v1269 = vmul.f32 %v1268, %v981
    %v1270 = vadd.f32 %v977, %v1269
    %v1271 = vld [vmem:[#allocation2] sm:$0xf]
    %v1272 = vsel %vm87, %v1271, -inf
    %v1273 = vrot.slane %v1272, 4
    %v1274 = vmax.f32 %v1272, %v1273
    %v1275 = vrot.slane %v1274, 2
    %v1276 = vmax.f32 %v1274, %v1275
    %v1277 = vrot.slane %v1276, 1
    %v1278 = vmax.f32 %v1276, %v1277
    %v1279 = vsub.f32 %v1271, %v1278
    %v1280 = vmul.f32 %v1279, 1.442695
    %v1281 = vpow.pop %v1280
    %v1282 = vsel %vm87, %v1281, 0.0
    %v1283 = vrot.slane %v1282, 4
    %v1284 = vadd.f32 %v1282, %v1283
    %v1285 = vrot.slane %v1284, 2
    %v1286 = vadd.f32 %v1284, %v1285
    %v1287 = vrot.slane %v1286, 1
    %v1288 = vadd.f32 %v1286, %v1287
    %v1289 = vlog2.pop %v1288
    %v1290 = vmul.f32 %v1289, 0.6931472
    %v1291 = vadd.f32 %v1278, %v1290
    %v1292 = vsub.f32 %v1270, %v85
    %v1293 = vmul.f32 %v1292, %v1292
    %v1294 = vrot.slane %v1293, 4
    %v1295 = vadd.f32 %v1293, %v1294
    %v1296 = vrot.slane %v1295, 2
    %v1297 = vadd.f32 %v1295, %v1296
    %v1298 = vrot.slane %v1297, 1
    %v1299 = vadd.f32 %v1297, %v1298
    %v1300 = vmul.f32 %v1299, 0.125
    %1301 = vst [vmem:[#allocation12] sm:$0x1] %v1291
    %1302 = vst [vmem:[#allocation12 + $0x1] sm:$0x1] %v1264
    %1303 = vst [vmem:[#allocation12 + $0x2] sm:$0x1] %v1300
    // Predicated region
    $region42: #{tpu_custom_call.1} parent=1 // pred_check
      _
    $region43: #{tpu_custom_call.1} parent=1 // pred_check_branch
      %1305 = sbr.rel (0) target = $region45
    $region44: #{tpu_custom_call.1} parent=1 // pred_region
      %s1307 = ssub.s32 64, 64
      %1308 = vsyncadd [#allocation5], %s1307
      %s1310 = sshll.u32 [#allocation12], 4
      %s1311 = int_to_ptr.vmem [resolvable:$true] %s1310
      %1313 = dma.vmem_to_hbm [thread:$0]  %s1311, 64, %s5, [#allocation5]
    $region45: #{tpu_custom_call.1} parent=1 // pred_fallthru
      _
    // Predicated region
    $region46: #{tpu_custom_call.1} parent=1 // pred_check
      _
    $region47: #{tpu_custom_call.1} parent=1 // pred_check_branch
      %1315 = sbr.rel (0) target = $region49
    $region48: #{tpu_custom_call.1} parent=1 // pred_region
      %1316 = dma.done [#allocation5], 64
    $region49: #{tpu_custom_call.1} parent=1 // pred_fallthru
      _
    %1317 = vsyncpa [#allocation4], 1
    %1318 = vsyncpa [#allocation7], 1
    %1319 = vsyncpa [#allocation10], 1
    %1320 = vsyncpa [#allocation5], 1

</llo_original>
